<compile_context>
chip_gen: v7x
topology: tpu7x:2x2x1
jax: 0.10.0
libtpu: 0.0.40
codegen_flags: <defaults>
</compile_context>

<pallas_src>
import numpy as np
import jax
import jax.numpy as jnp
from jax.experimental import pallas as pl
from jax.experimental.pallas import tpu as pltpu

CONV_K = 8
POOL_K = 4
LANE = 128
C1P = 384    # 320 -> 384
C2P = 512    # 480 -> 512
C3P = 1024   # 960 -> 1024


def _round_up(n, m):
    return ((n + m - 1) // m) * m


# ---------------------------------------------------------------------------
# Generation-aware VMEM budget (112 MiB on v5e/v6e, 56 MiB on v7x).
# ---------------------------------------------------------------------------
_VMEM_BUDGET = None


def _vmem_budget():
    global _VMEM_BUDGET
    if _VMEM_BUDGET is None:
        cap = 64 * 1024 * 1024                       # conservative fallback (v7x)
        try:
            info = pltpu.get_tpu_info()
            cap = int(getattr(info, "vmem_capacity_bytes", cap))
        except Exception:
            pass
        _VMEM_BUDGET = min(int(cap * 7 // 8), 112 * 1024 * 1024)
    return _VMEM_BUDGET


# ---------------------------------------------------------------------------
# Single-buffering of grid-invariant blocks (pl.Buffered(1)) — probed once.
# ---------------------------------------------------------------------------
_BUFFERED1 = None


def _buffered_one_supported():
    global _BUFFERED1
    if _BUFFERED1 is None:
        try:
            spec = pl.BlockSpec((8, LANE), lambda i: (0, 0),
                                pipeline_mode=pl.Buffered(1))

            def _k(x_ref, o_ref):
                o_ref[...] = x_ref[...] + 1.0

            x = jnp.zeros((8, LANE), jnp.float32)
            y = pl.pallas_call(
                _k,
                out_shape=jax.ShapeDtypeStruct((8, LANE), jnp.float32),
                grid=(2,),
                in_specs=[spec],
                out_specs=pl.BlockSpec((8, LANE), lambda i: (0, 0)),
            )(x)
            jax.block_until_ready(y)
            _BUFFERED1 = True
        except Exception:
            _BUFFERED1 = False
    return _BUFFERED1


def _invariant_spec(block_shape, index_map):
    """BlockSpec for a grid-invariant block; single-buffered when supported."""
    if _buffered_one_supported():
        return pl.BlockSpec(block_shape, index_map, pipeline_mode=pl.Buffered(1))
    return pl.BlockSpec(block_shape, index_map)


# ---------------------------------------------------------------------------
# Block sizing: block <= target, >= 2 grid steps whenever n >= 2, pad n up.
# ---------------------------------------------------------------------------
def _block_and_pad(n, target):
    n = max(int(n), 1)
    if n == 1:
        return 1, 1
    b = (n + 1) // 2                       # ceil(n/2) -> guarantees >= 2 steps
    if b >= 8:
        b = _round_up(b, 8)                # sublane-friendly when large
    b = max(1, min(b, int(target)))
    return b, _round_up(n, b)


def _conv_bt_target(seq_len, budget):
    """Cap the conv batch block so per-block intermediates stay well in VMEM."""
    lc1 = _round_up(seq_len - CONV_K + 1, 8)
    p1 = (seq_len - CONV_K + 1) // POOL_K
    lc2 = _round_up(max(p1 - CONV_K + 1, 1), 8)
    per_sample = max(lc1 * C1P * 4,                  # conv1 pre-pool f32 result
                     lc2 * CONV_K * C1P * 2)         # conv2 bf16 im2col columns
    return int(max(1, min(8, (budget // 4) // max(per_sample, 1))))


# ---------------------------------------------------------------------------
# Conv1d(valid) + bias + ReLU + optional MaxPool1d, fused, batched im2col form.
# ---------------------------------------------------------------------------
def conv_relu_pool(x, w_im2col, b2d, pool, K, bt):
    """x: (N, L_in, Cin) bf16 (N % bt == 0); w: (K*Cin, Cout) bf16; b: (1, Cout) f32."""
    N, L_in, Cin = x.shape
    KC, Cout = w_im2col.shape
    assert KC == K * Cin and N % bt == 0
    L_conv = L_in - K + 1
    assert L_conv >= 1
    P = L_conv // pool if pool > 1 else L_conv

    # Pad L so the im2col window length is a multiple of 8 (sublane tile):
    # the (bt, Lc_pad, K*Cin) -> (bt*Lc_pad, K*Cin) merge is then layout
    # preserving.  Padded rows feed only discarded output rows.
    Lc_pad = _round_up(L_conv, 8)
    L_need = Lc_pad + K - 1
    if L_need > L_in:
        x = jnp.pad(x, ((0, 0), (0, L_need - L_in), (0, 0)))
        L_in = L_need

    def kernel(x_ref, w_ref, b_ref, o_ref):
        xb = x_ref[...]                                         # (bt, L_in, Cin) bf16
        if K > 1:
            # im2col: K shifted windows concatenated along lanes (Cin is a
            # multiple of 128 here, so the concat is lane-tile aligned).
            cols = jnp.concatenate(
                [xb[:, k:k + Lc_pad, :] for k in range(K)], axis=-1)
        else:
            cols = xb                                           # already im2col'd
        cols = cols.reshape(bt * Lc_pad, KC)                    # layout-preserving
        acc = jnp.dot(cols, w_ref[...], preferred_element_type=jnp.float32)
        acc = jnp.maximum(acc + b_ref[...], 0.0)                # bias + ReLU in f32
        acc = acc.reshape(bt, Lc_pad, Cout)
        if pool > 1:                                            # MaxPool1d(pool, pool)
            acc = acc[:, :P * pool, :].reshape(bt, P, pool, Cout).max(axis=2)
        else:
            acc = acc[:, :P, :]
        o_ref[...] = acc.astype(o_ref.dtype)

    return pl.pallas_call(
        kernel,
        out_shape=jax.ShapeDtypeStruct((N, P, Cout), jnp.bfloat16),
        grid=(N // bt,),
        in_specs=[
            pl.BlockSpec((bt, L_in, Cin), lambda n: (n, 0, 0)),
            _invariant_spec((KC, Cout), lambda n: (0, 0)),
            _invariant_spec((1, Cout), lambda n: (0, 0)),
        ],
        out_specs=pl.BlockSpec((bt, P, Cout), lambda n: (n, 0, 0)),
        compiler_params=pltpu.CompilerParams(
            dimension_semantics=("parallel",),
            vmem_limit_bytes=_vmem_budget()),
    )(x, w_im2col, b2d)


# ---------------------------------------------------------------------------
# Classifier: Linear -> ReLU -> Linear -> Sigmoid, reduction grid over features
# ---------------------------------------------------------------------------
def classifier(feat, w1p, b1p, w2p, b2p, bn):
    """feat: (N, Fp) bf16 (N % bn == 0); w1p: (Fp, TP) bf16; w2p: (TP, TP) bf16."""
    N, Fp = feat.shape
    TP = w1p.shape[1]
    assert N % bn == 0
    budget = _vmem_budget()
    tk_target = 4096 if budget >= 96 * 1024 * 1024 else 1024     # v5e/v6e vs v7x
    TK = min(Fp, tk_target)
    while Fp % TK:                      # Fp is a multiple of 128 -> terminates
        TK -= LANE
    n_k = Fp // TK

    def kernel(f_ref, w1_ref, b1_ref, w2_ref, b2_ref, o_ref, acc_ref):
        k = pl.program_id(1)

        @pl.when(k == 0)
        def _():
            acc_ref[...] = jnp.zeros_like(acc_ref)

        acc_ref[...] += jnp.dot(f_ref[...], w1_ref[...],
                                preferred_element_type=jnp.float32)

        @pl.when(k == pl.num_programs(1) - 1)
        def _():
            h = jnp.maximum(acc_ref[...] + b1_ref[...], 0.0)
            z = jnp.dot(h.astype(jnp.bfloat16), w2_ref[...],
                        preferred_element_type=jnp.float32) + b2_ref[...]
            o_ref[...] = jax.nn.sigmoid(z).astype(o_ref.dtype)

    return pl.pallas_call(
        kernel,
        out_shape=jax.ShapeDtypeStruct((N, TP), jnp.float32),
        grid_spec=pltpu.PrefetchScalarGridSpec(
            num_scalar_prefetch=0,
            grid=(N // bn, n_k),
            in_specs=[
                pl.BlockSpec((bn, TK), lambda i, k: (i, k)),
                pl.BlockSpec((TK, TP), lambda i, k: (k, 0)),
                _invariant_spec((1, TP), lambda i, k: (0, 0)),
                _invariant_spec((TP, TP), lambda i, k: (0, 0)),
                _invariant_spec((1, TP), lambda i, k: (0, 0)),
            ],
            out_specs=pl.BlockSpec((bn, TP), lambda i, k: (i, 0)),
            scratch_shapes=[pltpu.VMEM((bn, TP), jnp.float32)],
        ),
        compiler_params=pltpu.CompilerParams(
            dimension_semantics=("parallel", "arbitrary"),
            vmem_limit_bytes=budget),
    )(feat, w1p, b1p, w2p, b2p)


# ---------------------------------------------------------------------------
# One-time host-side parameter preparation (transpose / pad / permute / bf16)
# ---------------------------------------------------------------------------
def prepare_params(params, n_channels):
    T = params["wl1"].shape[0]
    TP = _round_up(T, LANE)

    def conv_w(w_pt, cin_pad, cout_pad):
        cout, cin, k = w_pt.shape
        w = jnp.transpose(w_pt, (2, 1, 0))                       # (K, Cin, Cout)
        w = jnp.pad(w, ((0, 0), (0, cin_pad - cin), (0, cout_pad - cout)))
        return w.reshape(k * cin_pad, cout_pad).astype(jnp.bfloat16)

    def conv_b(b, cout_pad):
        return jnp.pad(b, (0, cout_pad - b.shape[0])).reshape(
            1, cout_pad).astype(jnp.float32)

    # Linear1: fold PyTorch flatten (N, 960, l) index c*n_ch + l into the
    # channels-last flatten index l*C3P + c, zero-padding the extra channels.
    wl1 = params["wl1"].reshape(T, 960, n_channels)              # (T, c, l)
    wl1 = jnp.transpose(wl1, (2, 1, 0))                          # (l, c, T)
    wl1 = jnp.pad(wl1, ((0, 0), (0, C3P - 960), (0, TP - T)))
    wl1 = wl1.reshape(n_channels * C3P, TP).astype(jnp.bfloat16)
    bl1 = jnp.pad(params["bl1"], (0, TP - T)).reshape(1, TP).astype(jnp.float32)

    wl2 = jnp.pad(jnp.transpose(params["wl2"]),
                  ((0, TP - T), (0, TP - T))).astype(jnp.bfloat16)
    bl2 = jnp.pad(params["bl2"], (0, TP - T)).reshape(1, TP).astype(jnp.float32)

    return dict(
        w1=conv_w(params["w1"], 4, C1P), b1=conv_b(params["b1"], C1P),
        w2=conv_w(params["w2"], C1P, C2P), b2=conv_b(params["b2"], C2P),
        w3=conv_w(params["w3"], C2P, C3P), b3=conv_b(params["b3"], C3P),
        wl1=wl1, bl1=bl1, wl2=wl2, bl2=bl2,
        n_channels=n_channels, n_targets=T, c3p=C3P)


def deepsea_forward(x_ncl, prep):
    """x_ncl: (N, 4, L), exactly like the PyTorch module's input."""
    n_ch = prep["n_channels"]
    N, _, L = x_ncl.shape
    budget = _vmem_budget()

    x = jnp.transpose(x_ncl, (0, 2, 1)).astype(jnp.bfloat16)        # (N, L, 4)

    # Layer-1 im2col hoisted to XLA: (N, L, 4) -> (N, L_conv1, 32); the first
    # conv kernel then runs as a plain (Bt*L, 32) x (32, 384) matmul.
    Lc1 = L - CONV_K + 1
    cols1 = jnp.concatenate([x[:, k:k + Lc1, :] for k in range(CONV_K)], axis=-1)

    bt, n_pad = _block_and_pad(N, _conv_bt_target(L, budget))
    if n_pad != N:
        cols1 = jnp.pad(cols1, ((0, n_pad - N), (0, 0), (0, 0)))

    h = conv_relu_pool(cols1, prep["w1"], prep["b1"], POOL_K, K=1, bt=bt)
    h = conv_relu_pool(h, prep["w2"], prep["b2"], POOL_K, K=CONV_K, bt=bt)
    h = conv_relu_pool(h, prep["w3"], prep["b3"], 1, K=CONV_K, bt=bt)   # (n_pad, n_ch, C3P)

    feat = h.reshape(n_pad, n_ch * prep["c3p"])                  # flatten folded into wl1

    bn_target = 512 if budget >= 96 * 1024 * 1024 else 256
    bn, n_pad2 = _block_and_pad(n_pad, bn_target)
    if n_pad2 != n_pad:
        feat = jnp.pad(feat, ((0, n_pad2 - n_pad), (0, 0)))

    out = classifier(feat, prep["wl1"], prep["bl1"], prep["wl2"], prep["bl2"], bn)
    return out[:N, :prep["n_targets"]]


# ---------------------------------------------------------------------------
# Pure-JAX (XLA) reference mirroring the PyTorch forward.
# matmul_dtype=bfloat16 mirrors the kernel's mixed precision exactly
# (bf16 matmul inputs, f32 accumulation / element-wise).
# ---------------------------------------------------------------------------
def deepsea_reference(x_ncl, params, n_channels, matmul_dtype=jnp.float32):
    md = matmul_dtype

    def conv1d(x, w, b):
        y = jax.lax.conv_general_dilated(
            x.astype(md), w.astype(md), window_strides=(1,), padding="VALID",
            dimension_numbers=("NCH", "OIH", "NCH"),
            preferred_element_type=jnp.float32)
        return y + b[None, :, None]

    def maxpool(x, k):
        n, c, l = x.shape
        p = l // k
        return x[:, :, :p * k].reshape(n, c, p, k).max(axis=-1)

    h = maxpool(jax.nn.relu(conv1d(x_ncl, params["w1"], params["b1"])), POOL_K)
    h = maxpool(jax.nn.relu(conv1d(h, params["w2"], params["b2"])), POOL_K)
    h = jax.nn.relu(conv1d(h, params["w3"], params["b3"]))
    feat = h.reshape(h.shape[0], 960 * n_channels)
    z = jnp.dot(feat.astype(md), params["wl1"].T.astype(md),
                preferred_element_type=jnp.float32) + params["bl1"]
    z = jnp.maximum(z, 0.0)
    z = jnp.dot(z.astype(md), params["wl2"].T.astype(md),
                preferred_element_type=jnp.float32) + params["bl2"]
    return jax.nn.sigmoid(z)


def compute_n_channels(sequence_length):
    reduce_by = CONV_K - 1
    pk = float(POOL_K)
    return int(np.floor(
        (np.floor((sequence_length - reduce_by) / pk) - reduce_by) / pk)
        - reduce_by)


if __name__ == "__main__":
    sequence_length = 200
    n_targets = 16
    batch = 2
    n_channels = compute_n_channels(sequence_length)
    assert n_channels >= 1

    key = jax.random.PRNGKey(0)
    ks = jax.random.split(key, 11)

    def init_w(k, shape, fan_in):
        return jax.random.normal(k, shape, jnp.float32) / np.sqrt(fan_in)

    params = {
        "w1": init_w(ks[0], (320, 4, CONV_K), 4 * CONV_K),
        "b1": 0.01 * jax.random.normal(ks[1], (320,), jnp.float32),
        "w2": init_w(ks[2], (480, 320, CONV_K), 320 * CONV_K),
        "b2": 0.01 * jax.random.normal(ks[3], (480,), jnp.float32),
        "w3": init_w(ks[4], (960, 480, CONV_K), 480 * CONV_K),
        "b3": 0.01 * jax.random.normal(ks[5], (960,), jnp.float32),
        "wl1": init_w(ks[6], (n_targets, 960 * n_channels), 960 * n_channels),
        "bl1": 0.01 * jax.random.normal(ks[7], (n_targets,), jnp.float32),
        "wl2": init_w(ks[8], (n_targets, n_targets), n_targets),
        "bl2": 0.01 * jax.random.normal(ks[9], (n_targets,), jnp.float32),
    }

    x = jax.random.normal(ks[10], (batch, 4, sequence_length), jnp.float32)

    prep = prepare_params(params, n_channels)          # one-time weight prep
    out = jax.block_until_ready(deepsea_forward(x, prep))
    assert out.shape == (batch, n_targets)

    # Strict check against an XLA reference that mirrors the kernel's mixed
    # precision (bf16 matmul inputs, f32 accumulation).
    ref_bf16 = jax.block_until_ready(
        deepsea_reference(x, params, n_channels, matmul_dtype=jnp.bfloat16))
    np.testing.assert_allclose(np.asarray(out), np.asarray(ref_bf16),
                               rtol=5e-3, atol=5e-3)

    # Loose sanity check against the full-f32 reference (bf16 rounding budget).
    ref_f32 = jax.block_until_ready(
        deepsea_reference(x, params, n_channels, matmul_dtype=jnp.float32))
    np.testing.assert_allclose(np.asarray(out), np.asarray(ref_f32),
                               rtol=3e-2, atol=3e-2)

    print("KERNEL_OK")
</pallas_src>

<mosaic_0001>
module attributes {stable_mosaic.version = 11 : i64} {
  func.func @_k(%arg0: i32, %arg1: memref<8x128xf32, #tpu.memory_space<vmem>>, %arg2: memref<8x128xf32, #tpu.memory_space<vmem>>) attributes {dimension_semantics = [#tpu.dimension_semantics<arbitrary>], iteration_bounds = array<i64: 2>, scalar_prefetch = 0 : i64, scratch_operands = 0 : i64, tpu.core_type = #tpu.core_type<tc>, window_params = [{pipeline_mode = #tpu.pipeline_mode<synchronous>, transform_indices = @transform_0, window_bounds = array<i64: 8, 128>}, {pipeline_mode = #tpu.pipeline_mode<synchronous>, transform_indices = @transform_1, window_bounds = array<i64: 8, 128>}]} {
    %c0 = arith.constant 0 : index
    %c0_0 = arith.constant 0 : index
    %0 = vector.load %arg1[%c0, %c0_0] : memref<8x128xf32, #tpu.memory_space<vmem>>, vector<8x128xf32>
    %cst = arith.constant 1.000000e+00 : f32
    %1 = vector.broadcast %cst : f32 to vector<8x128xf32>
    %2 = arith.addf %0, %1 : vector<8x128xf32>
    %c0_1 = arith.constant 0 : index
    %c0_2 = arith.constant 0 : index
    %3 = vector.load %arg2[%c0_1, %c0_2] : memref<8x128xf32, #tpu.memory_space<vmem>>, vector<8x128xf32>
    tpu.vector_store %arg2[%c0_1, %c0_2], %2 {strides = array<i32>} : memref<8x128xf32, #tpu.memory_space<vmem>>, vector<8x128xf32>,
    return
  }
  func.func @transform_0(%arg0: i32) -> (i32, i32) {
    %c0_i32 = arith.constant 0 : i32
    %c0_i32_0 = arith.constant 0 : i32
    %c0_i32_1 = arith.constant 0 : i32
    return %c0_i32, %c0_i32_0 : i32, i32
  }
  func.func @transform_1(%arg0: i32) -> (i32, i32) {
    %c0_i32 = arith.constant 0 : i32
    %c0_i32_0 = arith.constant 0 : i32
    %c0_i32_1 = arith.constant 0 : i32
    return %c0_i32, %c0_i32_0 : i32, i32
  }
}

module attributes {stable_mosaic.version = 11 : i64} {
  func.func @kernel(%arg0: i32, %arg1: memref<1x200x32xbf16, #tpu.memory_space<vmem>>, %arg2: memref<32x384xbf16, #tpu.memory_space<vmem>>, %arg3: memref<1x384xf32, #tpu.memory_space<vmem>>, %arg4: memref<1x48x384xbf16, #tpu.memory_space<vmem>>) attributes {dimension_semantics = [#tpu.dimension_semantics<parallel>], iteration_bounds = array<i64: 2>, scalar_prefetch = 0 : i64, scratch_operands = 0 : i64, tpu.core_type = #tpu.core_type<tc>, window_params = [{transform_indices = @transform_0, window_bounds = array<i64: 1, 200, 32>}, {pipeline_mode = #tpu.pipeline_mode<synchronous>, transform_indices = @transform_1, window_bounds = array<i64: 32, 384>}, {pipeline_mode = #tpu.pipeline_mode<synchronous>, transform_indices = @transform_2, window_bounds = array<i64: 1, 384>}, {transform_indices = @transform_3, window_bounds = array<i64: 1, 48, 384>}]} {
    %c0 = arith.constant 0 : index
    %c0_0 = arith.constant 0 : index
    %c0_1 = arith.constant 0 : index
    %0 = vector.load %arg1[%c0, %c0_0, %c0_1] : memref<1x200x32xbf16, #tpu.memory_space<vmem>>, vector<1x200x32xbf16>
    %1 = vector.shape_cast %0 : vector<1x200x32xbf16> to vector<200x32xbf16>
    %c0_2 = arith.constant 0 : index
    %c0_3 = arith.constant 0 : index
    %2 = vector.load %arg2[%c0_2, %c0_3] : memref<32x384xbf16, #tpu.memory_space<vmem>>, vector<32x384xbf16>
    %cst = arith.constant dense<0.000000e+00> : vector<200x384xf32>
    %3 = tpu.matmul %1, %2, %cst {dimension_numbers = #tpu.dot_dimension_numbers<[1], [0], [0], [1], [0, 0, 1, 1], [], []>} : vector<200x32xbf16>, vector<32x384xbf16>, vector<200x384xf32> -> vector<200x384xf32>
    %c0_4 = arith.constant 0 : index
    %c0_5 = arith.constant 0 : index
    %4 = vector.load %arg3[%c0_4, %c0_5] : memref<1x384xf32, #tpu.memory_space<vmem>>, vector<1x384xf32>
    %5 = vector.broadcast %4 : vector<1x384xf32> to vector<200x384xf32>
    %6 = arith.addf %3, %5 : vector<200x384xf32>
    %cst_6 = arith.constant 0.000000e+00 : f32
    %7 = vector.broadcast %cst_6 : f32 to vector<200x384xf32>
    %8 = arith.maximumf %6, %7 : vector<200x384xf32>
    %9 = vector.shape_cast %8 : vector<200x384xf32> to vector<1x200x384xf32>
    %10 = vector.extract_strided_slice %9 {offsets = [0, 0, 0], sizes = [1, 192, 384], strides = [1, 1, 1]} : vector<1x200x384xf32> to vector<1x192x384xf32>
    %11 = vector.shape_cast %10 : vector<1x192x384xf32> to vector<1x48x4x384xf32>
    %cst_7 = arith.constant dense<0xFF800000> : vector<1x48x384xf32>
    %12 = vector.multi_reduction <maximumf>, %11, %cst_7 [2] : vector<1x48x4x384xf32> to vector<1x48x384xf32>
    %13 = arith.truncf %12 : vector<1x48x384xf32> to vector<1x48x384xbf16>
    %c0_8 = arith.constant 0 : index
    %c0_9 = arith.constant 0 : index
    %c0_10 = arith.constant 0 : index
    %14 = vector.load %arg4[%c0_8, %c0_9, %c0_10] : memref<1x48x384xbf16, #tpu.memory_space<vmem>>, vector<1x48x384xbf16>
    tpu.vector_store %arg4[%c0_8, %c0_9, %c0_10], %13 {strides = array<i32>} : memref<1x48x384xbf16, #tpu.memory_space<vmem>>, vector<1x48x384xbf16>,
    return
  }
  func.func @transform_0(%arg0: i32) -> (i32, i32, i32) {
    %c0_i32 = arith.constant 0 : i32
    %c0_i32_0 = arith.constant 0 : i32
    %c0_i32_1 = arith.constant 0 : i32
    return %arg0, %c0_i32, %c0_i32_0 : i32, i32, i32
  }
  func.func @transform_1(%arg0: i32) -> (i32, i32) {
    %c0_i32 = arith.constant 0 : i32
    %c0_i32_0 = arith.constant 0 : i32
    %c0_i32_1 = arith.constant 0 : i32
    return %c0_i32, %c0_i32_0 : i32, i32
  }
  func.func @transform_2(%arg0: i32) -> (i32, i32) {
    %c0_i32 = arith.constant 0 : i32
    %c0_i32_0 = arith.constant 0 : i32
    %c0_i32_1 = arith.constant 0 : i32
    return %c0_i32, %c0_i32_0 : i32, i32
  }
  func.func @transform_3(%arg0: i32) -> (i32, i32, i32) {
    %c0_i32 = arith.constant 0 : i32
    %c0_i32_0 = arith.constant 0 : i32
    %c0_i32_1 = arith.constant 0 : i32
    return %arg0, %c0_i32, %c0_i32_0 : i32, i32, i32
  }
}

</mosaic_0001>

<llo_original>
// kernel: tpu_custom_call.1
$region0: #{tpu_custom_call.1}
  #allocation0 [shape = 'u32[]', space=smem, size = 0x4, offset = 0x4, fixed_abs, tag = 'smem constant byte address 0x4 - core index']
  #allocation1 [shape = 'u32[144,128]{1,0:T(1,128)}', space=vmem, size = 0x12000, scoped, tag = 'internal scratch']
  %s0 = inlined_call_operand.hbm [shape: f32[8,128], index: 0, kind: input, shape index: {}]
  %s1 = inlined_call_operand.hbm [shape: f32[8,128], index: 1, kind: output, shape index: {}]
  %s2 = sld [smem:[#allocation0]]
  $region41: #{tpu_custom_call.1} parent=0
    _
  %s4 = ssub.s32 1, %s2
  %s5 = scalar_select 0, %s4, %s2
  $region1: #{tpu_custom_call.1} parent=0
    #allocation2 [shape = 'u8[4096]{0}', space=vmem, size = 0x1000, scoped, tag = 'input window, operand 0, single buffered']
    #allocation3 [shape = 's32[2]{0}', space=sflag, size = 0x8, scoped, tag = 'scoped memory for tpu_custom_call.1']
    #allocation4 [shape = 's32[2]{0}', space=sflag, size = 0x8, scoped, tag = 'scoped memory for tpu_custom_call.1']
    #allocation5 [shape = 'u8[4096]{0}', space=vmem, size = 0x1000, scoped, tag = 'output window, operand 0, single buffered']
    %6 = vsyncpa [#allocation3], 0
    %7 = vsyncpa [#allocation4], 0
    loop: start=0, step=1, limit=4
    $region2: #{tpu_custom_call.1} parent=1 // loop_pre_header
      _
    $region3: #{tpu_custom_call.1} parent=1 // loop_header
      %s9 = sphi 0, %s13
      %p10 = scmp.ge.s32.totalorder %s9, 4
      %s17 = sphi 0, %s17
      %s19 = sphi 0, %s17
      %s20 = sphi 0, %s19
      %s34 = sphi 0, %s20
      %s38 = sphi 0, %s38
      %s40 = sphi 0, %s38
      %s41 = sphi 0, %s40
      %s55 = sphi 0, %s41
    $region4: #{tpu_custom_call.1} parent=1 // loop_header_branch
      %12 = sbr.rel (%p10) target = $region8
    $region5: #{tpu_custom_call.1} parent=1 // loop_body
      %s14 = ssub.s32 %s9, 1
      %s15 = ssub.s32 %s9, 2
      %s16 = sadd.s32 %s9, 1
      %s18 = sadd.s32 %s17, 1
      %p21 = scmp.eq.s32.totalorder %s9, 1
      %p22 = scmp.ne.s32.totalorder %s17, %s19
      %p23 = scmp.eq.s32.totalorder %s9, 0
      %p24 = por %p22, %p23
      %p25 = scmp.ne.s32.totalorder %s17, %s19
      %p26 = scmp.eq.s32.totalorder %s14, 1
      %p27 = por %p25, %p26
      %p28 = scmp.ne.s32.totalorder %s19, %s20
      %p29 = scmp.eq.s32.totalorder %s14, 0
      %p30 = por %p28, %p29
      %p31 = scmp.ne.s32.totalorder %s19, %s20
      %p32 = scmp.eq.s32.totalorder %s15, 1
      %p33 = por %p31, %p32
      %p35 = scmp.ne.s32.totalorder %s20, %s34
      %p36 = scmp.eq.s32.totalorder %s15, 0
      %p37 = por %p35, %p36
      %s39 = sadd.s32 %s38, 1
      %p42 = scmp.eq.s32.totalorder %s9, 1
      %p43 = scmp.ne.s32.totalorder %s38, %s40
      %p44 = scmp.eq.s32.totalorder %s9, 0
      %p45 = por %p43, %p44
      %p46 = scmp.ne.s32.totalorder %s38, %s40
      %p47 = scmp.eq.s32.totalorder %s14, 1
      %p48 = por %p46, %p47
      %p49 = scmp.ne.s32.totalorder %s40, %s41
      %p50 = scmp.eq.s32.totalorder %s14, 0
      %p51 = por %p49, %p50
      %p52 = scmp.ne.s32.totalorder %s40, %s41
      %p53 = scmp.eq.s32.totalorder %s15, 1
      %p54 = por %p52, %p53
      %p56 = scmp.ne.s32.totalorder %s41, %s55
      %p57 = scmp.eq.s32.totalorder %s15, 0
      %p58 = por %p56, %p57
      %p59 = scmp.le.s32.totalorder 1, %s9
      %p60 = scmp.lt.s32.totalorder %s9, 3
      %p61 = pnand %p59, %p60
      %p62 = pneg %p61
      // Predicated region
      $region9: #{tpu_custom_call.1} parent=5 // pred_check
        _
      $region10: #{tpu_custom_call.1} parent=5 // pred_check_branch
        %64 = sbr.rel (%p61) target = $region12
      $region11: #{tpu_custom_call.1} parent=5 // pred_region
        %s65 = ssub.s32 %s9, 1
        // Predicated region
        $region13: #{tpu_custom_call.1} parent=11 // pred_check
          %p66 = pneg %p30
        $region14: #{tpu_custom_call.1} parent=11 // pred_check_branch
          %68 = sbr.rel (%p66) target = $region16
        $region15: #{tpu_custom_call.1} parent=11 // pred_region
          %s70 = ssub.s32 128, 128
          %71 = vsyncadd [#allocation3], %s70
          %s73 = sshll.u32 [#allocation2], 4
          %s74 = int_to_ptr.vmem [resolvable:$true] %s73
          %76 = dma.hbm_to_vmem [thread:$0]  %s0, 128, %s74, [#allocation3]
        $region16: #{tpu_custom_call.1} parent=11 // pred_fallthru
          _
      $region12: #{tpu_custom_call.1} parent=5 // pred_fallthru
        _
      %p77 = scmp.lt.s32.totalorder %s9, 2
      // Predicated region
      $region17: #{tpu_custom_call.1} parent=5 // pred_check
        %p78 = pneg %p77
      $region18: #{tpu_custom_call.1} parent=5 // pred_check_branch
        %80 = sbr.rel (%p78) target = $region20
      $region19: #{tpu_custom_call.1} parent=5 // pred_region
        _
      $region20: #{tpu_custom_call.1} parent=5 // pred_fallthru
        _
      %p81 = scmp.le.s32.totalorder 1, %s9
      %p82 = scmp.lt.s32.totalorder %s9, 3
      %p83 = pnand %p81, %p82
      %p84 = pneg %p83
      // Predicated region
      $region21: #{tpu_custom_call.1} parent=5 // pred_check
        _
      $region22: #{tpu_custom_call.1} parent=5 // pred_check_branch
        %86 = sbr.rel (%p83) target = $region24
      $region23: #{tpu_custom_call.1} parent=5 // pred_region
        %s87 = ssub.s32 %s9, 1
        // Predicated region
        $region25: #{tpu_custom_call.1} parent=23 // pred_check
          %p88 = pneg %p30
        $region26: #{tpu_custom_call.1} parent=23 // pred_check_branch
          %90 = sbr.rel (%p88) target = $region28
        $region27: #{tpu_custom_call.1} parent=23 // pred_region
          %91 = dma.done [#allocation3], 128
        $region28: #{tpu_custom_call.1} parent=23 // pred_fallthru
          _
        %p92 = pneg %p30
        %p93 = pneg %p27
        %p94 = pneg %p51
        %p95 = pneg %p48
        %v96 = vld [vmem:[#allocation2] sm:$0xff]
        %v97 = vadd.f32 %v96, 1.0
        %98 = vst [vmem:[#allocation5] sm:$0xff] %v97
        // Predicated region
        $region29: #{tpu_custom_call.1} parent=23 // pred_check
          %p99 = pneg %p48
        $region30: #{tpu_custom_call.1} parent=23 // pred_check_branch
          %101 = sbr.rel (%p99) target = $region32
        $region31: #{tpu_custom_call.1} parent=23 // pred_region
          %s103 = ssub.s32 128, 128
          %104 = vsyncadd [#allocation4], %s103
          %s106 = sshll.u32 [#allocation5], 4
          %s107 = int_to_ptr.vmem [resolvable:$true] %s106
          %109 = dma.vmem_to_hbm [thread:$0]  %s107, 128, %s1, [#allocation4]
        $region32: #{tpu_custom_call.1} parent=23 // pred_fallthru
          _
        // Predicated region
        $region33: #{tpu_custom_call.1} parent=23 // pred_check
          %p110 = pneg %p48
        $region34: #{tpu_custom_call.1} parent=23 // pred_check_branch
          %112 = sbr.rel (%p110) target = $region36
        $region35: #{tpu_custom_call.1} parent=23 // pred_region
          %113 = dma.done [#allocation4], 128
        $region36: #{tpu_custom_call.1} parent=23 // pred_fallthru
          _
      $region24: #{tpu_custom_call.1} parent=5 // pred_fallthru
        _
      %p114 = scmp.le.s32.totalorder 2, %s9
      // Predicated region
      $region37: #{tpu_custom_call.1} parent=5 // pred_check
        %p115 = pneg %p114
      $region38: #{tpu_custom_call.1} parent=5 // pred_check_branch
        %117 = sbr.rel (%p115) target = $region40
      $region39: #{tpu_custom_call.1} parent=5 // pred_region
        %s118 = ssub.s32 %s9, 2
      $region40: #{tpu_custom_call.1} parent=5 // pred_fallthru
        _
    $region6: #{tpu_custom_call.1} parent=1 // loop_footer
      %s13 = sadd.s32 1, %s9
    $region7: #{tpu_custom_call.1} parent=1 // loop_footer_branch
      %8 = sbr.rel target = $region3
    $region8: #{tpu_custom_call.1} parent=1 // loop_exit
      _
    %119 = vsyncpa [#allocation3], 1
    %s120 = scalar_lea.sflag [#allocation3], 1
    %121 = vsyncpa %s120, 1
    %122 = vsyncpa [#allocation4], 1
    %s123 = scalar_lea.sflag [#allocation4], 1
    %124 = vsyncpa %s123, 1

// kernel: tpu_custom_call.1
$region0: #{tpu_custom_call.1}
  #allocation0 [shape = 'u32[]', space=smem, size = 0x4, offset = 0x4, fixed_abs, tag = 'smem constant byte address 0x4 - core index']
  #allocation1 [shape = 'u32[144,128]{1,0:T(1,128)}', space=vmem, size = 0x12000, scoped, tag = 'internal scratch']
  %s0 = inlined_call_operand.vmem [shape: bf16[2,200,32], index: 0, kind: input, shape index: {}]
  %s1 = inlined_call_operand.vmem [shape: bf16[32,384], index: 1, kind: input, shape index: {}]
  %s2 = inlined_call_operand.vmem [shape: f32[1,384], index: 2, kind: input, shape index: {}]
  %s3 = inlined_call_operand.hbm [shape: bf16[2,48,384], index: 3, kind: output, shape index: {}]
  %s4 = sld [smem:[#allocation0]]
  $region45: #{tpu_custom_call.1} parent=0
    _
  %s6 = ssub.s32 1, %s4
  %s7 = scalar_select 0, %s6, %s4
  $region1: #{tpu_custom_call.1} parent=0
    #allocation2 [shape = 'u8[73728]{0}', space=vmem, size = 0x12000, scoped, tag = 'output window, operand 0']
    #allocation3 [shape = 's32[2]{0}', space=sflag, size = 0x8, scoped, tag = 'scoped memory for tpu_custom_call.1']
    %8 = vsyncpa [#allocation3], 0
    %s9 = scalar_lea.sflag [#allocation3], 1
    %10 = vsyncpa %s9, 0
    loop: start=0, step=1, limit=4
    $region2: #{tpu_custom_call.1} parent=1 // loop_pre_header
      _
    $region3: #{tpu_custom_call.1} parent=1 // loop_header
      %s12 = sphi 0, %s16
      %p13 = scmp.ge.s32.totalorder %s12, 4
      %s22 = sphi 0, %s24
      %s25 = sphi 0, %s22
      %s26 = sphi 0, %s25
      %s42 = sphi 0, %s26
      %s46 = sphi 0, %s46
      %s48 = sphi 0, %s46
      %s49 = sphi 0, %s48
      %s63 = sphi 0, %s49
      %s67 = sphi 0, %s67
      %s69 = sphi 0, %s67
      %s70 = sphi 0, %s69
      %s84 = sphi 0, %s70
      %s90 = sphi 0, %s92
      %s93 = sphi 0, %s90
      %s94 = sphi 0, %s93
      %s110 = sphi 0, %s94
    $region4: #{tpu_custom_call.1} parent=1 // loop_header_branch
      %15 = sbr.rel (%p13) target = $region8
    $region5: #{tpu_custom_call.1} parent=1 // loop_body
      %s17 = ssub.s32 %s12, 1
      %s18 = ssub.s32 %s12, 2
      %s19 = sadd.s32 %s12, 1
      %s20 = ssub.s32 %s12, %s19
      %p21 = scmp.eq.s32.totalorder %s20, 0
      %s23 = sadd.s32 %s22, 1
      %s24 = scalar_select %p21, %s22, %s23
      %p27 = pneg %p21
      %p28 = scmp.eq.s32.totalorder %s12, 1
      %p29 = por %p27, %p28
      %p30 = scmp.ne.s32.totalorder %s22, %s25
      %p31 = scmp.eq.s32.totalorder %s12, 0
      %p32 = por %p30, %p31
      %p33 = scmp.ne.s32.totalorder %s22, %s25
      %p34 = scmp.eq.s32.totalorder %s17, 1
      %p35 = por %p33, %p34
      %p36 = scmp.ne.s32.totalorder %s25, %s26
      %p37 = scmp.eq.s32.totalorder %s17, 0
      %p38 = por %p36, %p37
      %p39 = scmp.ne.s32.totalorder %s25, %s26
      %p40 = scmp.eq.s32.totalorder %s18, 1
      %p41 = por %p39, %p40
      %p43 = scmp.ne.s32.totalorder %s26, %s42
      %p44 = scmp.eq.s32.totalorder %s18, 0
      %p45 = por %p43, %p44
      %s47 = sadd.s32 %s46, 1
      %p50 = scmp.eq.s32.totalorder %s12, 1
      %p51 = scmp.ne.s32.totalorder %s46, %s48
      %p52 = scmp.eq.s32.totalorder %s12, 0
      %p53 = por %p51, %p52
      %p54 = scmp.ne.s32.totalorder %s46, %s48
      %p55 = scmp.eq.s32.totalorder %s17, 1
      %p56 = por %p54, %p55
      %p57 = scmp.ne.s32.totalorder %s48, %s49
      %p58 = scmp.eq.s32.totalorder %s17, 0
      %p59 = por %p57, %p58
      %p60 = scmp.ne.s32.totalorder %s48, %s49
      %p61 = scmp.eq.s32.totalorder %s18, 1
      %p62 = por %p60, %p61
      %p64 = scmp.ne.s32.totalorder %s49, %s63
      %p65 = scmp.eq.s32.totalorder %s18, 0
      %p66 = por %p64, %p65
      %s68 = sadd.s32 %s67, 1
      %p71 = scmp.eq.s32.totalorder %s12, 1
      %p72 = scmp.ne.s32.totalorder %s67, %s69
      %p73 = scmp.eq.s32.totalorder %s12, 0
      %p74 = por %p72, %p73
      %p75 = scmp.ne.s32.totalorder %s67, %s69
      %p76 = scmp.eq.s32.totalorder %s17, 1
      %p77 = por %p75, %p76
      %p78 = scmp.ne.s32.totalorder %s69, %s70
      %p79 = scmp.eq.s32.totalorder %s17, 0
      %p80 = por %p78, %p79
      %p81 = scmp.ne.s32.totalorder %s69, %s70
      %p82 = scmp.eq.s32.totalorder %s18, 1
      %p83 = por %p81, %p82
      %p85 = scmp.ne.s32.totalorder %s70, %s84
      %p86 = scmp.eq.s32.totalorder %s18, 0
      %p87 = por %p85, %p86
      %s88 = ssub.s32 %s12, %s19
      %p89 = scmp.eq.s32.totalorder %s88, 0
      %s91 = sadd.s32 %s90, 1
      %s92 = scalar_select %p89, %s90, %s91
      %p95 = pneg %p89
      %p96 = scmp.eq.s32.totalorder %s12, 1
      %p97 = por %p95, %p96
      %p98 = scmp.ne.s32.totalorder %s90, %s93
      %p99 = scmp.eq.s32.totalorder %s12, 0
      %p100 = por %p98, %p99
      %p101 = scmp.ne.s32.totalorder %s90, %s93
      %p102 = scmp.eq.s32.totalorder %s17, 1
      %p103 = por %p101, %p102
      %p104 = scmp.ne.s32.totalorder %s93, %s94
      %p105 = scmp.eq.s32.totalorder %s17, 0
      %p106 = por %p104, %p105
      %p107 = scmp.ne.s32.totalorder %s93, %s94
      %p108 = scmp.eq.s32.totalorder %s18, 1
      %p109 = por %p107, %p108
      %p111 = scmp.ne.s32.totalorder %s94, %s110
      %p112 = scmp.eq.s32.totalorder %s18, 0
      %p113 = por %p111, %p112
      %p114 = scmp.le.s32.totalorder 1, %s12
      %p115 = scmp.lt.s32.totalorder %s12, 3
      %p116 = pnand %p114, %p115
      %p117 = pneg %p116
      // Predicated region
      $region9: #{tpu_custom_call.1} parent=5 // pred_check
        _
      $region10: #{tpu_custom_call.1} parent=5 // pred_check_branch
        %119 = sbr.rel (%p116) target = $region12
      $region11: #{tpu_custom_call.1} parent=5 // pred_region
        %s120 = ssub.s32 %s12, 1
        // Predicated region
        $region13: #{tpu_custom_call.1} parent=11 // pred_check
          %p121 = pneg %p59
        $region14: #{tpu_custom_call.1} parent=11 // pred_check_branch
          %123 = sbr.rel (%p121) target = $region16
        $region15: #{tpu_custom_call.1} parent=11 // pred_region
          _
        $region16: #{tpu_custom_call.1} parent=11 // pred_fallthru
          _
        // Predicated region
        $region17: #{tpu_custom_call.1} parent=11 // pred_check
          %p124 = pneg %p80
        $region18: #{tpu_custom_call.1} parent=11 // pred_check_branch
          %126 = sbr.rel (%p124) target = $region20
        $region19: #{tpu_custom_call.1} parent=11 // pred_region
          _
        $region20: #{tpu_custom_call.1} parent=11 // pred_fallthru
          _
      $region12: #{tpu_custom_call.1} parent=5 // pred_fallthru
        _
      %p127 = scmp.lt.s32.totalorder %s12, 2
      // Predicated region
      $region21: #{tpu_custom_call.1} parent=5 // pred_check
        %p128 = pneg %p127
      $region22: #{tpu_custom_call.1} parent=5 // pred_check_branch
        %130 = sbr.rel (%p128) target = $region24
      $region23: #{tpu_custom_call.1} parent=5 // pred_region
        // Predicated region
        $region25: #{tpu_custom_call.1} parent=23 // pred_check
          %p131 = pneg %p32
        $region26: #{tpu_custom_call.1} parent=23 // pred_check_branch
          %133 = sbr.rel (%p131) target = $region28
        $region27: #{tpu_custom_call.1} parent=23 // pred_region
          %p134 = scmp.lt.s32.totalorder %s12, 1
          %s135 = scalar_select %p134, %s12, 1
          %s136 = smul.addr %s135, 25
          %s137 = smul.addr %s136, 4
          %s138 = scalar_lea.vmem %s0, %s137
        $region28: #{tpu_custom_call.1} parent=23 // pred_fallthru
          _
      $region24: #{tpu_custom_call.1} parent=5 // pred_fallthru
        _
      %p139 = scmp.le.s32.totalorder 1, %s12
      %p140 = scmp.lt.s32.totalorder %s12, 3
      %p141 = pnand %p139, %p140
      %p142 = pneg %p141
      // Predicated region
      $region29: #{tpu_custom_call.1} parent=5 // pred_check
        _
      $region30: #{tpu_custom_call.1} parent=5 // pred_check_branch
        %144 = sbr.rel (%p141) target = $region32
      $region31: #{tpu_custom_call.1} parent=5 // pred_region
        %s145 = ssub.s32 %s12, 1
        %p146 = scmp.lt.s32.totalorder %s17, 1
        %s147 = scalar_select %p146, %s17, 1
        %s148 = smul.addr %s147, 25
        %s149 = smul.addr %s148, 4
        %s150 = scalar_lea.vmem %s0, %s149
        %p151 = pneg %p38
        %p152 = pneg %p35
        %p153 = pneg %p59
        %p154 = pneg %p56
        %p155 = pneg %p80
        %p156 = pneg %p77
        %p157 = pneg %p106
        %p158 = pneg %p103
        %s159 = sand.u32 %s93, 1
        %s160 = scalar_lea.sflag [#allocation3], %s159
        %s161 = sand.u32 %s93, 1
        %s162 = smul.addr %s161, 72
        %s163 = scalar_lea.vmem [#allocation2], %s162
        %p164 = scmp.lt.s32.totalorder %s17, 1
        %s165 = scalar_select %p164, %s17, 1
        %s166 = smul.addr %s165, 25
        %s167 = smul.addr %s166, 4
        %s168 = scalar_lea.vmem %s0, %s167
        %v170 = vld [vmem:[%s168] sm:$0xf]
        %v171 = vld [vmem:[%s168 + $0x4] sm:$0xf]
        %v172 = vld [vmem:[%s168 + $0x8] sm:$0xf]
        %v173 = vld [vmem:[%s168 + $0xc] sm:$0xf]
        %v174 = vld [vmem:[%s168 + $0x10] sm:$0xf]
        %v175 = vld [vmem:[%s168 + $0x14] sm:$0xf]
        %v176 = vld [vmem:[%s168 + $0x18] sm:$0xf]
        %v177 = vld [vmem:[%s168 + $0x1c] sm:$0xf]
        %v178 = vld [vmem:[%s168 + $0x20] sm:$0xf]
        %v179 = vld [vmem:[%s168 + $0x24] sm:$0xf]
        %v180 = vld [vmem:[%s168 + $0x28] sm:$0xf]
        %v181 = vld [vmem:[%s168 + $0x2c] sm:$0xf]
        %v182 = vld [vmem:[%s168 + $0x30] sm:$0xf]
        %v183 = vld [vmem:[%s168 + $0x34] sm:$0xf]
        %v184 = vld [vmem:[%s168 + $0x38] sm:$0xf]
        %v185 = vld [vmem:[%s168 + $0x3c] sm:$0xf]
        %v186 = vld [vmem:[%s168 + $0x40] sm:$0xf]
        %v187 = vld [vmem:[%s168 + $0x44] sm:$0xf]
        %v188 = vld [vmem:[%s168 + $0x48] sm:$0xf]
        %v189 = vld [vmem:[%s168 + $0x4c] sm:$0xf]
        %v190 = vld [vmem:[%s168 + $0x50] sm:$0xf]
        %v191 = vld [vmem:[%s168 + $0x54] sm:$0xf]
        %v192 = vld [vmem:[%s168 + $0x58] sm:$0xf]
        %v193 = vld [vmem:[%s168 + $0x5c] sm:$0xf]
        %v194 = vld [vmem:[%s168 + $0x60] sm:$0xf]
        %v195 = vld [vmem:[%s1] sm:$0xff]
        %v196 = vld [vmem:[%s1 + $0x8] sm:$0xf]
        %v197 = vld [vmem:[%s1 + $0xc] sm:$0xff]
        %v198 = vld [vmem:[%s1 + $0x14] sm:$0xf]
        %v199 = vld [vmem:[%s1 + $0x18] sm:$0xff]
        %v200 = vld [vmem:[%s1 + $0x20] sm:$0xf]
        %v201 = vld [vmem:[%s1 + $0x24] sm:$0xff]
        %v202 = vld [vmem:[%s1 + $0x2c] sm:$0xf]
        %v203 = vld [vmem:[%s2] sm:$0x7]
        %v205 = vlaneseq
        %v206 = vshrl.u32 %v205, 7
        %v207 = vsub.s32 0, %v206
        %v208 = vrot.slane %v203, %v207
        %v209 = vlaneseq
        %v210 = vshrl.u32 %v209, 7
        %v211 = vsub.s32 1, %v210
        %v212 = vrot.slane %v203, %v211
        %v213 = vlaneseq
        %v214 = vshrl.u32 %v213, 7
        %v215 = vsub.s32 2, %v214
        %v216 = vrot.slane %v203, %v215
        %v245 = vunpack.c.l.b16 %v170
        %v246 = vunpack.c.l.b16 %v171
        %v247 = vunpack.c.l.b16 %v172
        %v248 = vunpack.c.l.b16 %v173
        %v249 = vunpack.c.l.b16 %v174
        %v250 = vunpack.c.l.b16 %v175
        %v251 = vunpack.c.l.b16 %v176
        %v252 = vunpack.c.l.b16 %v177
        %v253 = vunpack.c.l.b16 %v178
        %v254 = vunpack.c.l.b16 %v179
        %v255 = vunpack.c.l.b16 %v180
        %v256 = vunpack.c.l.b16 %v181
        %v257 = vunpack.c.l.b16 %v182
        %v258 = vunpack.c.l.b16 %v183
        %v259 = vunpack.c.l.b16 %v184
        %v260 = vunpack.c.l.b16 %v185
        %v261 = vunpack.c.l.b16 %v186
        %v262 = vunpack.c.l.b16 %v187
        %v263 = vunpack.c.l.b16 %v188
        %v264 = vunpack.c.l.b16 %v189
        %v265 = vunpack.c.l.b16 %v190
        %v266 = vunpack.c.l.b16 %v191
        %v267 = vunpack.c.l.b16 %v192
        %v268 = vunpack.c.l.b16 %v193
        %v269 = vunpack.c.l.b16 %v194
        %v270 = vpack.c.b16 %v246, %v245
        %v271 = vpack.c.b16 %v248, %v247
        %v272 = vpack.c.b16 %v250, %v249
        %v273 = vpack.c.b16 %v252, %v251
        %v274 = vpack.c.b16 %v254, %v253
        %v275 = vpack.c.b16 %v256, %v255
        %v276 = vpack.c.b16 %v258, %v257
        %v277 = vpack.c.b16 %v260, %v259
        %v278 = vpack.c.b16 %v262, %v261
        %v279 = vpack.c.b16 %v264, %v263
        %v280 = vpack.c.b16 %v266, %v265
        %v281 = vpack.c.b16 %v268, %v267
        %v282 = vpack.c.b16 %v269, %v269
        %v291 = vunpack.c.l.b16 %v195
        %v292 = vunpack.c.h.b16 %v195
        %v293 = vunpack.c.l.b16 %v196
        %v294 = vunpack.c.l.b16 %v197
        %v295 = vunpack.c.h.b16 %v197
        %v296 = vunpack.c.l.b16 %v198
        %v297 = vunpack.c.l.b16 %v199
        %v298 = vunpack.c.h.b16 %v199
        %v299 = vunpack.c.l.b16 %v200
        %v300 = vunpack.c.l.b16 %v201
        %v301 = vunpack.c.h.b16 %v201
        %v302 = vunpack.c.l.b16 %v202
        %v303 = vpack.c.b16 %v294, %v291
        %v304 = vpack.c.b16 %v295, %v292
        %v305 = vpack.c.b16 %v296, %v293
        %v306 = vpack.c.b16 %v300, %v297
        %v307 = vpack.c.b16 %v301, %v298
        %v308 = vpack.c.b16 %v302, %v299
        %vm315 = vcmask 261120
        %v317 = vsel %vm315, %v270, 0
        %v320 = vsel %vm315, %v271, 0
        %v323 = vsel %vm315, %v272, 0
        %v326 = vsel %vm315, %v273, 0
        %v329 = vsel %vm315, %v274, 0
        %v332 = vsel %vm315, %v275, 0
        %v335 = vsel %vm315, %v276, 0
        %v338 = vsel %vm315, %v277, 0
        %v341 = vsel %vm315, %v278, 0
        %v344 = vsel %vm315, %v279, 0
        %v347 = vsel %vm315, %v280, 0
        %v350 = vsel %vm315, %v281, 0
        %v353 = vsel %vm315, %v282, 0
        %355 = vmatprep.subr.bf16.mxu0 %v304
        %356 = vmatpush1.bf16.msra.mxu0 %v303
        %357 = vmatprep.subr.bf16.mxu0 %v307
        %358 = vmatpush1.bf16.msra.mxu0 %v306
        %359 = vmatprep.subr.bf16.mxu0 0
        %360 = vmatpush1.bf16.msra.mxu0 0
        %361 = vmatprep.subr.bf16.mxu0 0
        %362 = vmatpush1.bf16.msra.mxu0 0
        %363 = vmatprep.subr.bf16.mxu0 0
        %364 = vmatpush1.bf16.msra.mxu0 0
        %365 = vmatprep.subr.bf16.mxu0 0
        %366 = vmatpush1.bf16.msra.mxu0 0
        %367 = vmatprep.subr.bf16.mxu0 0
        %368 = vmatpush1.bf16.msra.mxu0 0
        %369 = vmatprep.subr.bf16.mxu0 0
        %370 = vmatpush1.bf16.msra.mxu0 0
        %371 = vmatprep.subr.bf16.mxu0 0
        %372 = vmatpush1.bf16.msra.mxu0 0
        %373 = vmatprep.subr.bf16.mxu0 0
        %374 = vmatpush1.bf16.msra.mxu0 0
        %375 = vmatprep.subr.bf16.mxu0 0
        %376 = vmatpush1.bf16.msra.mxu0 0
        %377 = vmatprep.subr.bf16.mxu0 0
        %378 = vmatpush1.bf16.msra.mxu0 0
        %379 = vmatprep.subr.bf16.mxu0 0
        %380 = vmatpush1.bf16.msra.mxu0 0
        %381 = vmatprep.subr.bf16.mxu0 0
        %382 = vmatpush1.bf16.msra.mxu0 0
        %383 = vmatprep.subr.bf16.mxu0 0
        %384 = vmatpush1.bf16.msra.mxu0 0
        %385 = vmatprep.subr.bf16.mxu0 0
        %386 = vmatpush1.bf16.msra.mxu0 0
        %387 = vmatprep.mubr.bf16.mxu0 0
        %388 = vmatmul.mubr.bf16.gmra.mrb[0].mxu0 %v317
        %v389 = vpop.f32.mrb[0].mxu0
        %v390 = vadd.f32 %v208, %v389
        %v391 = vpop.f32.mrb[0].mxu0
        %v392 = vadd.f32 %v212, %v391
        %v393 = vpop.f32.mrb[0].mxu0
        %v394 = vadd.f32 %v208, %v393
        %v395 = vpop.f32.mrb[0].mxu0
        %v396 = vadd.f32 %v212, %v395
        %397 = vmatprep.mubr.bf16.mxu0 0
        %398 = vmatmul.mubr.bf16.gmra.mrb[0].mxu0 %v320
        %v399 = vpop.f32.mrb[0].mxu0
        %v400 = vadd.f32 %v208, %v399
        %v401 = vpop.f32.mrb[0].mxu0
        %v402 = vadd.f32 %v212, %v401
        %v403 = vpop.f32.mrb[0].mxu0
        %v404 = vadd.f32 %v208, %v403
        %v405 = vpop.f32.mrb[0].mxu0
        %v406 = vadd.f32 %v212, %v405
        %407 = vmatprep.mubr.bf16.mxu0 0
        %408 = vmatmul.mubr.bf16.gmra.mrb[0].mxu0 %v323
        %v409 = vpop.f32.mrb[0].mxu0
        %v410 = vadd.f32 %v208, %v409
        %v411 = vpop.f32.mrb[0].mxu0
        %v412 = vadd.f32 %v212, %v411
        %v413 = vpop.f32.mrb[0].mxu0
        %v414 = vadd.f32 %v208, %v413
        %v415 = vpop.f32.mrb[0].mxu0
        %v416 = vadd.f32 %v212, %v415
        %417 = vmatprep.mubr.bf16.mxu0 0
        %418 = vmatmul.mubr.bf16.gmra.mrb[0].mxu0 %v326
        %v419 = vpop.f32.mrb[0].mxu0
        %v420 = vadd.f32 %v208, %v419
        %v421 = vpop.f32.mrb[0].mxu0
        %v422 = vadd.f32 %v212, %v421
        %v423 = vpop.f32.mrb[0].mxu0
        %v424 = vadd.f32 %v208, %v423
        %v425 = vpop.f32.mrb[0].mxu0
        %v426 = vadd.f32 %v212, %v425
        %427 = vmatprep.mubr.bf16.mxu0 0
        %428 = vmatmul.mubr.bf16.gmra.mrb[0].mxu0 %v329
        %v429 = vpop.f32.mrb[0].mxu0
        %v430 = vadd.f32 %v208, %v429
        %v431 = vpop.f32.mrb[0].mxu0
        %v432 = vadd.f32 %v212, %v431
        %v433 = vpop.f32.mrb[0].mxu0
        %v434 = vadd.f32 %v208, %v433
        %v435 = vpop.f32.mrb[0].mxu0
        %v436 = vadd.f32 %v212, %v435
        %437 = vmatprep.mubr.bf16.mxu0 0
        %438 = vmatmul.mubr.bf16.gmra.mrb[0].mxu0 %v332
        %v439 = vpop.f32.mrb[0].mxu0
        %v440 = vadd.f32 %v208, %v439
        %v441 = vpop.f32.mrb[0].mxu0
        %v442 = vadd.f32 %v212, %v441
        %v443 = vpop.f32.mrb[0].mxu0
        %v444 = vadd.f32 %v208, %v443
        %v445 = vpop.f32.mrb[0].mxu0
        %v446 = vadd.f32 %v212, %v445
        %447 = vmatprep.mubr.bf16.mxu0 0
        %448 = vmatmul.mubr.bf16.gmra.mrb[0].mxu0 %v335
        %v449 = vpop.f32.mrb[0].mxu0
        %v450 = vadd.f32 %v208, %v449
        %v451 = vpop.f32.mrb[0].mxu0
        %v452 = vadd.f32 %v212, %v451
        %v453 = vpop.f32.mrb[0].mxu0
        %v454 = vadd.f32 %v208, %v453
        %v455 = vpop.f32.mrb[0].mxu0
        %v456 = vadd.f32 %v212, %v455
        %457 = vmatprep.mubr.bf16.mxu0 0
        %458 = vmatmul.mubr.bf16.gmra.mrb[0].mxu0 %v338
        %v459 = vpop.f32.mrb[0].mxu0
        %v460 = vadd.f32 %v208, %v459
        %v461 = vpop.f32.mrb[0].mxu0
        %v462 = vadd.f32 %v212, %v461
        %v463 = vpop.f32.mrb[0].mxu0
        %v464 = vadd.f32 %v208, %v463
        %v465 = vpop.f32.mrb[0].mxu0
        %v466 = vadd.f32 %v212, %v465
        %467 = vmatprep.mubr.bf16.mxu0 0
        %468 = vmatmul.mubr.bf16.gmra.mrb[0].mxu0 %v341
        %v469 = vpop.f32.mrb[0].mxu0
        %v470 = vadd.f32 %v208, %v469
        %v471 = vpop.f32.mrb[0].mxu0
        %v472 = vadd.f32 %v212, %v471
        %v473 = vpop.f32.mrb[0].mxu0
        %v474 = vadd.f32 %v208, %v473
        %v475 = vpop.f32.mrb[0].mxu0
        %v476 = vadd.f32 %v212, %v475
        %477 = vmatprep.mubr.bf16.mxu0 0
        %478 = vmatmul.mubr.bf16.gmra.mrb[0].mxu0 %v344
        %v479 = vpop.f32.mrb[0].mxu0
        %v480 = vadd.f32 %v208, %v479
        %v481 = vpop.f32.mrb[0].mxu0
        %v482 = vadd.f32 %v212, %v481
        %v483 = vpop.f32.mrb[0].mxu0
        %v484 = vadd.f32 %v208, %v483
        %v485 = vpop.f32.mrb[0].mxu0
        %v486 = vadd.f32 %v212, %v485
        %487 = vmatprep.mubr.bf16.mxu0 0
        %488 = vmatmul.mubr.bf16.gmra.mrb[0].mxu0 %v347
        %v489 = vpop.f32.mrb[0].mxu0
        %v490 = vadd.f32 %v208, %v489
        %v491 = vpop.f32.mrb[0].mxu0
        %v492 = vadd.f32 %v212, %v491
        %v493 = vpop.f32.mrb[0].mxu0
        %v494 = vadd.f32 %v208, %v493
        %v495 = vpop.f32.mrb[0].mxu0
        %v496 = vadd.f32 %v212, %v495
        %497 = vmatprep.mubr.bf16.mxu0 0
        %498 = vmatmul.mubr.bf16.gmra.mrb[0].mxu0 %v350
        %v499 = vpop.f32.mrb[0].mxu0
        %v500 = vadd.f32 %v208, %v499
        %v501 = vpop.f32.mrb[0].mxu0
        %v502 = vadd.f32 %v212, %v501
        %v503 = vpop.f32.mrb[0].mxu0
        %v504 = vadd.f32 %v208, %v503
        %v505 = vpop.f32.mrb[0].mxu0
        %v506 = vadd.f32 %v212, %v505
        %507 = vmatprep.mubr.bf16.mxu0 0
        %508 = vmatmul.mubr.bf16.gmra.mrb[0].mxu0 %v353
        %v509 = vpop.f32.mrb[0].mxu0
        %v510 = vpop.f32.mrb[0].mxu0
        %v511 = vpop.f32.mrb[0].mxu0
        %v512 = vpop.f32.mrb[0].mxu0
        %513 = vdwg.mxu0
        %514 = vmatprep.subr.bf16.mxu0 0
        %515 = vmatpush1.bf16.msra.mxu0 %v305
        %516 = vmatprep.subr.bf16.mxu0 0
        %517 = vmatpush1.bf16.msra.mxu0 %v308
        %518 = vmatprep.subr.bf16.mxu0 0
        %519 = vmatpush1.bf16.msra.mxu0 0
        %520 = vmatprep.subr.bf16.mxu0 0
        %521 = vmatpush1.bf16.msra.mxu0 0
        %522 = vmatprep.subr.bf16.mxu0 0
        %523 = vmatpush1.bf16.msra.mxu0 0
        %524 = vmatprep.subr.bf16.mxu0 0
        %525 = vmatpush1.bf16.msra.mxu0 0
        %526 = vmatprep.subr.bf16.mxu0 0
        %527 = vmatpush1.bf16.msra.mxu0 0
        %528 = vmatprep.subr.bf16.mxu0 0
        %529 = vmatpush1.bf16.msra.mxu0 0
        %530 = vmatprep.subr.bf16.mxu0 0
        %531 = vmatpush1.bf16.msra.mxu0 0
        %532 = vmatprep.subr.bf16.mxu0 0
        %533 = vmatpush1.bf16.msra.mxu0 0
        %534 = vmatprep.subr.bf16.mxu0 0
        %535 = vmatpush1.bf16.msra.mxu0 0
        %536 = vmatprep.subr.bf16.mxu0 0
        %537 = vmatpush1.bf16.msra.mxu0 0
        %538 = vmatprep.subr.bf16.mxu0 0
        %539 = vmatpush1.bf16.msra.mxu0 0
        %540 = vmatprep.subr.bf16.mxu0 0
        %541 = vmatpush1.bf16.msra.mxu0 0
        %542 = vmatprep.subr.bf16.mxu0 0
        %543 = vmatpush1.bf16.msra.mxu0 0
        %544 = vmatprep.subr.bf16.mxu0 0
        %545 = vmatpush1.bf16.msra.mxu0 0
        %546 = vmatprep.mubr.bf16.mxu0 0
        %547 = vmatmul.mubr.bf16.gmra.mrb[0].mxu0 %v317
        %v548 = vpop.f32.mrb[0].mxu0
        %v549 = vadd.f32 %v216, %v548
        %v550 = vpop.f32.mrb[0].mxu0
        %v551 = vpop.f32.mrb[0].mxu0
        %v552 = vadd.f32 %v216, %v551
        %v553 = vpop.f32.mrb[0].mxu0
        %554 = vmatprep.mubr.bf16.mxu0 0
        %555 = vmatmul.mubr.bf16.gmra.mrb[0].mxu0 %v320
        %v556 = vpop.f32.mrb[0].mxu0
        %v557 = vadd.f32 %v216, %v556
        %v558 = vpop.f32.mrb[0].mxu0
        %v559 = vpop.f32.mrb[0].mxu0
        %v560 = vadd.f32 %v216, %v559
        %v561 = vpop.f32.mrb[0].mxu0
        %562 = vmatprep.mubr.bf16.mxu0 0
        %563 = vmatmul.mubr.bf16.gmra.mrb[0].mxu0 %v323
        %v564 = vpop.f32.mrb[0].mxu0
        %v565 = vadd.f32 %v216, %v564
        %v566 = vpop.f32.mrb[0].mxu0
        %v567 = vpop.f32.mrb[0].mxu0
        %v568 = vadd.f32 %v216, %v567
        %v569 = vpop.f32.mrb[0].mxu0
        %570 = vmatprep.mubr.bf16.mxu0 0
        %571 = vmatmul.mubr.bf16.gmra.mrb[0].mxu0 %v326
        %v572 = vpop.f32.mrb[0].mxu0
        %v573 = vadd.f32 %v216, %v572
        %v574 = vpop.f32.mrb[0].mxu0
        %v575 = vpop.f32.mrb[0].mxu0
        %v576 = vadd.f32 %v216, %v575
        %v577 = vpop.f32.mrb[0].mxu0
        %578 = vmatprep.mubr.bf16.mxu0 0
        %579 = vmatmul.mubr.bf16.gmra.mrb[0].mxu0 %v329
        %v580 = vpop.f32.mrb[0].mxu0
        %v581 = vadd.f32 %v216, %v580
        %v582 = vpop.f32.mrb[0].mxu0
        %v583 = vpop.f32.mrb[0].mxu0
        %v584 = vadd.f32 %v216, %v583
        %v585 = vpop.f32.mrb[0].mxu0
        %586 = vmatprep.mubr.bf16.mxu0 0
        %587 = vmatmul.mubr.bf16.gmra.mrb[0].mxu0 %v332
        %v588 = vpop.f32.mrb[0].mxu0
        %v589 = vadd.f32 %v216, %v588
        %v590 = vpop.f32.mrb[0].mxu0
        %v591 = vpop.f32.mrb[0].mxu0
        %v592 = vadd.f32 %v216, %v591
        %v593 = vpop.f32.mrb[0].mxu0
        %594 = vmatprep.mubr.bf16.mxu0 0
        %595 = vmatmul.mubr.bf16.gmra.mrb[0].mxu0 %v335
        %v596 = vpop.f32.mrb[0].mxu0
        %v597 = vadd.f32 %v216, %v596
        %v598 = vpop.f32.mrb[0].mxu0
        %v599 = vpop.f32.mrb[0].mxu0
        %v600 = vadd.f32 %v216, %v599
        %v601 = vpop.f32.mrb[0].mxu0
        %602 = vmatprep.mubr.bf16.mxu0 0
        %603 = vmatmul.mubr.bf16.gmra.mrb[0].mxu0 %v338
        %v604 = vpop.f32.mrb[0].mxu0
        %v605 = vadd.f32 %v216, %v604
        %v606 = vpop.f32.mrb[0].mxu0
        %v607 = vpop.f32.mrb[0].mxu0
        %v608 = vadd.f32 %v216, %v607
        %v609 = vpop.f32.mrb[0].mxu0
        %610 = vmatprep.mubr.bf16.mxu0 0
        %611 = vmatmul.mubr.bf16.gmra.mrb[0].mxu0 %v341
        %v612 = vpop.f32.mrb[0].mxu0
        %v613 = vadd.f32 %v216, %v612
        %v614 = vpop.f32.mrb[0].mxu0
        %v615 = vpop.f32.mrb[0].mxu0
        %v616 = vadd.f32 %v216, %v615
        %v617 = vpop.f32.mrb[0].mxu0
        %618 = vmatprep.mubr.bf16.mxu0 0
        %619 = vmatmul.mubr.bf16.gmra.mrb[0].mxu0 %v344
        %v620 = vpop.f32.mrb[0].mxu0
        %v621 = vadd.f32 %v216, %v620
        %v622 = vpop.f32.mrb[0].mxu0
        %v623 = vpop.f32.mrb[0].mxu0
        %v624 = vadd.f32 %v216, %v623
        %v625 = vpop.f32.mrb[0].mxu0
        %626 = vmatprep.mubr.bf16.mxu0 0
        %627 = vmatmul.mubr.bf16.gmra.mrb[0].mxu0 %v347
        %v628 = vpop.f32.mrb[0].mxu0
        %v629 = vadd.f32 %v216, %v628
        %v630 = vpop.f32.mrb[0].mxu0
        %v631 = vpop.f32.mrb[0].mxu0
        %v632 = vadd.f32 %v216, %v631
        %v633 = vpop.f32.mrb[0].mxu0
        %634 = vmatprep.mubr.bf16.mxu0 0
        %635 = vmatmul.mubr.bf16.gmra.mrb[0].mxu0 %v350
        %v636 = vpop.f32.mrb[0].mxu0
        %v637 = vadd.f32 %v216, %v636
        %v638 = vpop.f32.mrb[0].mxu0
        %v639 = vpop.f32.mrb[0].mxu0
        %v640 = vadd.f32 %v216, %v639
        %v641 = vpop.f32.mrb[0].mxu0
        %642 = vmatprep.mubr.bf16.mxu0 0
        %643 = vmatmul.mubr.bf16.gmra.mrb[0].mxu0 %v353
        %v644 = vpop.f32.mrb[0].mxu0
        %v645 = vpop.f32.mrb[0].mxu0
        %v646 = vpop.f32.mrb[0].mxu0
        %v647 = vpop.f32.mrb[0].mxu0
        %648 = vdwg.mxu0
        %v649 = vmax.f32 %v390, 0.0
        %v650 = vmax.f32 %v392, 0.0
        %v651 = vmax.f32 %v549, 0.0
        %v652 = vmax.f32 %v394, 0.0
        %v653 = vmax.f32 %v396, 0.0
        %v654 = vmax.f32 %v552, 0.0
        %v655 = vmax.f32 %v400, 0.0
        %v656 = vmax.f32 %v402, 0.0
        %v657 = vmax.f32 %v557, 0.0
        %v658 = vmax.f32 %v404, 0.0
        %v659 = vmax.f32 %v406, 0.0
        %v660 = vmax.f32 %v560, 0.0
        %v661 = vmax.f32 %v410, 0.0
        %v662 = vmax.f32 %v412, 0.0
        %v663 = vmax.f32 %v565, 0.0
        %v664 = vmax.f32 %v414, 0.0
        %v665 = vmax.f32 %v416, 0.0
        %v666 = vmax.f32 %v568, 0.0
        %v667 = vmax.f32 %v420, 0.0
        %v668 = vmax.f32 %v422, 0.0
        %v669 = vmax.f32 %v573, 0.0
        %v670 = vmax.f32 %v424, 0.0
        %v671 = vmax.f32 %v426, 0.0
        %v672 = vmax.f32 %v576, 0.0
        %v673 = vmax.f32 %v430, 0.0
        %v674 = vmax.f32 %v432, 0.0
        %v675 = vmax.f32 %v581, 0.0
        %v676 = vmax.f32 %v434, 0.0
        %v677 = vmax.f32 %v436, 0.0
        %v678 = vmax.f32 %v584, 0.0
        %v679 = vmax.f32 %v440, 0.0
        %v680 = vmax.f32 %v442, 0.0
        %v681 = vmax.f32 %v589, 0.0
        %v682 = vmax.f32 %v444, 0.0
        %v683 = vmax.f32 %v446, 0.0
        %v684 = vmax.f32 %v592, 0.0
        %v685 = vmax.f32 %v450, 0.0
        %v686 = vmax.f32 %v452, 0.0
        %v687 = vmax.f32 %v597, 0.0
        %v688 = vmax.f32 %v454, 0.0
        %v689 = vmax.f32 %v456, 0.0
        %v690 = vmax.f32 %v600, 0.0
        %v691 = vmax.f32 %v460, 0.0
        %v692 = vmax.f32 %v462, 0.0
        %v693 = vmax.f32 %v605, 0.0
        %v694 = vmax.f32 %v464, 0.0
        %v695 = vmax.f32 %v466, 0.0
        %v696 = vmax.f32 %v608, 0.0
        %v697 = vmax.f32 %v470, 0.0
        %v698 = vmax.f32 %v472, 0.0
        %v699 = vmax.f32 %v613, 0.0
        %v700 = vmax.f32 %v474, 0.0
        %v701 = vmax.f32 %v476, 0.0
        %v702 = vmax.f32 %v616, 0.0
        %v703 = vmax.f32 %v480, 0.0
        %v704 = vmax.f32 %v482, 0.0
        %v705 = vmax.f32 %v621, 0.0
        %v706 = vmax.f32 %v484, 0.0
        %v707 = vmax.f32 %v486, 0.0
        %v708 = vmax.f32 %v624, 0.0
        %v709 = vmax.f32 %v490, 0.0
        %v710 = vmax.f32 %v492, 0.0
        %v711 = vmax.f32 %v629, 0.0
        %v712 = vmax.f32 %v494, 0.0
        %v713 = vmax.f32 %v496, 0.0
        %v714 = vmax.f32 %v632, 0.0
        %v715 = vmax.f32 %v500, 0.0
        %v716 = vmax.f32 %v502, 0.0
        %v717 = vmax.f32 %v637, 0.0
        %v718 = vmax.f32 %v504, 0.0
        %v719 = vmax.f32 %v506, 0.0
        %v720 = vmax.f32 %v640, 0.0
        %v793 = vcombine.low %v649, %v650
        %v794 = vcombine.high %v649, %v650
        %v795 = vcombine.high %v651, %v651
        %v796 = vcombine.low %v652, %v653
        %v797 = vcombine.high %v652, %v653
        %v798 = vcombine.high %v654, %v654
        %v799 = vcombine.low %v655, %v656
        %v800 = vcombine.high %v655, %v656
        %v801 = vcombine.high %v657, %v657
        %v802 = vcombine.low %v658, %v659
        %v803 = vcombine.high %v658, %v659
        %v804 = vcombine.high %v660, %v660
        %v805 = vcombine.low %v661, %v662
        %v806 = vcombine.high %v661, %v662
        %v807 = vcombine.high %v663, %v663
        %v808 = vcombine.low %v664, %v665
        %v809 = vcombine.high %v664, %v665
        %v810 = vcombine.high %v666, %v666
        %v811 = vcombine.low %v667, %v668
        %v812 = vcombine.high %v667, %v668
        %v813 = vcombine.high %v669, %v669
        %v814 = vcombine.low %v670, %v671
        %v815 = vcombine.high %v670, %v671
        %v816 = vcombine.high %v672, %v672
        %v817 = vcombine.low %v673, %v674
        %v818 = vcombine.high %v673, %v674
        %v819 = vcombine.high %v675, %v675
        %v820 = vcombine.low %v676, %v677
        %v821 = vcombine.high %v676, %v677
        %v822 = vcombine.high %v678, %v678
        %v823 = vcombine.low %v679, %v680
        %v824 = vcombine.high %v679, %v680
        %v825 = vcombine.high %v681, %v681
        %v826 = vcombine.low %v682, %v683
        %v827 = vcombine.high %v682, %v683
        %v828 = vcombine.high %v684, %v684
        %v829 = vcombine.low %v685, %v686
        %v830 = vcombine.high %v685, %v686
        %v831 = vcombine.high %v687, %v687
        %v832 = vcombine.low %v688, %v689
        %v833 = vcombine.high %v688, %v689
        %v834 = vcombine.high %v690, %v690
        %v835 = vcombine.low %v691, %v692
        %v836 = vcombine.high %v691, %v692
        %v837 = vcombine.high %v693, %v693
        %v838 = vcombine.low %v694, %v695
        %v839 = vcombine.high %v694, %v695
        %v840 = vcombine.high %v696, %v696
        %v841 = vcombine.low %v697, %v698
        %v842 = vcombine.high %v697, %v698
        %v843 = vcombine.high %v699, %v699
        %v844 = vcombine.low %v700, %v701
        %v845 = vcombine.high %v700, %v701
        %v846 = vcombine.high %v702, %v702
        %v847 = vcombine.low %v703, %v704
        %v848 = vcombine.high %v703, %v704
        %v849 = vcombine.high %v705, %v705
        %v850 = vcombine.low %v706, %v707
        %v851 = vcombine.high %v706, %v707
        %v852 = vcombine.high %v708, %v708
        %v853 = vcombine.low %v709, %v710
        %v854 = vcombine.high %v709, %v710
        %v855 = vcombine.high %v711, %v711
        %v856 = vcombine.low %v712, %v713
        %v857 = vcombine.high %v712, %v713
        %v858 = vcombine.high %v714, %v714
        %v859 = vcombine.low %v715, %v716
        %v860 = vcombine.high %v715, %v716
        %v861 = vcombine.high %v717, %v717
        %v862 = vcombine.low %v718, %v719
        %v863 = vcombine.high %v718, %v719
        %v864 = vcombine.high %v720, %v720
        %v937 = vcombine.high %v793, %v793
        %v938 = vcombine.high %v794, %v794
        %v939 = vcombine.high %v796, %v796
        %v940 = vcombine.high %v797, %v797
        %v941 = vcombine.high %v799, %v799
        %v942 = vcombine.high %v800, %v800
        %v943 = vcombine.high %v802, %v802
        %v944 = vcombine.high %v803, %v803
        %v945 = vcombine.high %v805, %v805
        %v946 = vcombine.high %v806, %v806
        %v947 = vcombine.high %v808, %v808
        %v948 = vcombine.high %v809, %v809
        %v949 = vcombine.high %v811, %v811
        %v950 = vcombine.high %v812, %v812
        %v951 = vcombine.high %v814, %v814
        %v952 = vcombine.high %v815, %v815
        %v953 = vcombine.high %v817, %v817
        %v954 = vcombine.high %v818, %v818
        %v955 = vcombine.high %v820, %v820
        %v956 = vcombine.high %v821, %v821
        %v957 = vcombine.high %v823, %v823
        %v958 = vcombine.high %v824, %v824
        %v959 = vcombine.high %v826, %v826
        %v960 = vcombine.high %v827, %v827
        %v961 = vcombine.high %v829, %v829
        %v962 = vcombine.high %v830, %v830
        %v963 = vcombine.high %v832, %v832
        %v964 = vcombine.high %v833, %v833
        %v965 = vcombine.high %v835, %v835
        %v966 = vcombine.high %v836, %v836
        %v967 = vcombine.high %v838, %v838
        %v968 = vcombine.high %v839, %v839
        %v969 = vcombine.high %v841, %v841
        %v970 = vcombine.high %v842, %v842
        %v971 = vcombine.high %v844, %v844
        %v972 = vcombine.high %v845, %v845
        %v973 = vcombine.high %v847, %v847
        %v974 = vcombine.high %v848, %v848
        %v975 = vcombine.high %v850, %v850
        %v976 = vcombine.high %v851, %v851
        %v977 = vcombine.high %v853, %v853
        %v978 = vcombine.high %v854, %v854
        %v979 = vcombine.high %v856, %v856
        %v980 = vcombine.high %v857, %v857
        %v981 = vcombine.high %v859, %v859
        %v982 = vcombine.high %v860, %v860
        %v983 = vcombine.high %v862, %v862
        %v984 = vcombine.high %v863, %v863
        %vm1033 = vcmask 1043456
        %v1034 = vsel %vm1033, %v793, -inf
        %v1035 = vrot.slane %v1034, 4
        %v1036 = vmax.f32 %v1034, %v1035
        %v1037 = vrot.slane %v1036, 2
        %v1038 = vmax.f32 %v1036, %v1037
        %v1039 = vrot.slane %v1038, 1
        %v1040 = vmax.f32 %v1038, %v1039
        %v1041 = vsel %vm1033, %v937, -inf
        %v1042 = vrot.slane %v1041, 4
        %v1043 = vmax.f32 %v1041, %v1042
        %v1044 = vrot.slane %v1043, 2
        %v1045 = vmax.f32 %v1043, %v1044
        %v1046 = vrot.slane %v1045, 1
        %v1047 = vmax.f32 %v1045, %v1046
        %v1048 = vsel %vm1033, %v651, -inf
        %v1049 = vrot.slane %v1048, 4
        %v1050 = vmax.f32 %v1048, %v1049
        %v1051 = vrot.slane %v1050, 2
        %v1052 = vmax.f32 %v1050, %v1051
        %v1053 = vrot.slane %v1052, 1
        %v1054 = vmax.f32 %v1052, %v1053
        %v1055 = vsel %vm1033, %v794, -inf
        %v1056 = vrot.slane %v1055, 4
        %v1057 = vmax.f32 %v1055, %v1056
        %v1058 = vrot.slane %v1057, 2
        %v1059 = vmax.f32 %v1057, %v1058
        %v1060 = vrot.slane %v1059, 1
        %v1061 = vmax.f32 %v1059, %v1060
        %v1062 = vsel %vm1033, %v938, -inf
        %v1063 = vrot.slane %v1062, 4
        %v1064 = vmax.f32 %v1062, %v1063
        %v1065 = vrot.slane %v1064, 2
        %v1066 = vmax.f32 %v1064, %v1065
        %v1067 = vrot.slane %v1066, 1
        %v1068 = vmax.f32 %v1066, %v1067
        %v1069 = vsel %vm1033, %v795, -inf
        %v1070 = vrot.slane %v1069, 4
        %v1071 = vmax.f32 %v1069, %v1070
        %v1072 = vrot.slane %v1071, 2
        %v1073 = vmax.f32 %v1071, %v1072
        %v1074 = vrot.slane %v1073, 1
        %v1075 = vmax.f32 %v1073, %v1074
        %v1076 = vsel %vm1033, %v796, -inf
        %v1077 = vrot.slane %v1076, 4
        %v1078 = vmax.f32 %v1076, %v1077
        %v1079 = vrot.slane %v1078, 2
        %v1080 = vmax.f32 %v1078, %v1079
        %v1081 = vrot.slane %v1080, 1
        %v1082 = vmax.f32 %v1080, %v1081
        %v1083 = vsel %vm1033, %v939, -inf
        %v1084 = vrot.slane %v1083, 4
        %v1085 = vmax.f32 %v1083, %v1084
        %v1086 = vrot.slane %v1085, 2
        %v1087 = vmax.f32 %v1085, %v1086
        %v1088 = vrot.slane %v1087, 1
        %v1089 = vmax.f32 %v1087, %v1088
        %v1090 = vsel %vm1033, %v654, -inf
        %v1091 = vrot.slane %v1090, 4
        %v1092 = vmax.f32 %v1090, %v1091
        %v1093 = vrot.slane %v1092, 2
        %v1094 = vmax.f32 %v1092, %v1093
        %v1095 = vrot.slane %v1094, 1
        %v1096 = vmax.f32 %v1094, %v1095
        %v1097 = vsel %vm1033, %v797, -inf
        %v1098 = vrot.slane %v1097, 4
        %v1099 = vmax.f32 %v1097, %v1098
        %v1100 = vrot.slane %v1099, 2
        %v1101 = vmax.f32 %v1099, %v1100
        %v1102 = vrot.slane %v1101, 1
        %v1103 = vmax.f32 %v1101, %v1102
        %v1104 = vsel %vm1033, %v940, -inf
        %v1105 = vrot.slane %v1104, 4
        %v1106 = vmax.f32 %v1104, %v1105
        %v1107 = vrot.slane %v1106, 2
        %v1108 = vmax.f32 %v1106, %v1107
        %v1109 = vrot.slane %v1108, 1
        %v1110 = vmax.f32 %v1108, %v1109
        %v1111 = vsel %vm1033, %v798, -inf
        %v1112 = vrot.slane %v1111, 4
        %v1113 = vmax.f32 %v1111, %v1112
        %v1114 = vrot.slane %v1113, 2
        %v1115 = vmax.f32 %v1113, %v1114
        %v1116 = vrot.slane %v1115, 1
        %v1117 = vmax.f32 %v1115, %v1116
        %v1118 = vsel %vm1033, %v799, -inf
        %v1119 = vrot.slane %v1118, 4
        %v1120 = vmax.f32 %v1118, %v1119
        %v1121 = vrot.slane %v1120, 2
        %v1122 = vmax.f32 %v1120, %v1121
        %v1123 = vrot.slane %v1122, 1
        %v1124 = vmax.f32 %v1122, %v1123
        %v1125 = vsel %vm1033, %v941, -inf
        %v1126 = vrot.slane %v1125, 4
        %v1127 = vmax.f32 %v1125, %v1126
        %v1128 = vrot.slane %v1127, 2
        %v1129 = vmax.f32 %v1127, %v1128
        %v1130 = vrot.slane %v1129, 1
        %v1131 = vmax.f32 %v1129, %v1130
        %v1132 = vsel %vm1033, %v657, -inf
        %v1133 = vrot.slane %v1132, 4
        %v1134 = vmax.f32 %v1132, %v1133
        %v1135 = vrot.slane %v1134, 2
        %v1136 = vmax.f32 %v1134, %v1135
        %v1137 = vrot.slane %v1136, 1
        %v1138 = vmax.f32 %v1136, %v1137
        %v1139 = vsel %vm1033, %v800, -inf
        %v1140 = vrot.slane %v1139, 4
        %v1141 = vmax.f32 %v1139, %v1140
        %v1142 = vrot.slane %v1141, 2
        %v1143 = vmax.f32 %v1141, %v1142
        %v1144 = vrot.slane %v1143, 1
        %v1145 = vmax.f32 %v1143, %v1144
        %v1146 = vsel %vm1033, %v942, -inf
        %v1147 = vrot.slane %v1146, 4
        %v1148 = vmax.f32 %v1146, %v1147
        %v1149 = vrot.slane %v1148, 2
        %v1150 = vmax.f32 %v1148, %v1149
        %v1151 = vrot.slane %v1150, 1
        %v1152 = vmax.f32 %v1150, %v1151
        %v1153 = vsel %vm1033, %v801, -inf
        %v1154 = vrot.slane %v1153, 4
        %v1155 = vmax.f32 %v1153, %v1154
        %v1156 = vrot.slane %v1155, 2
        %v1157 = vmax.f32 %v1155, %v1156
        %v1158 = vrot.slane %v1157, 1
        %v1159 = vmax.f32 %v1157, %v1158
        %v1160 = vsel %vm1033, %v802, -inf
        %v1161 = vrot.slane %v1160, 4
        %v1162 = vmax.f32 %v1160, %v1161
        %v1163 = vrot.slane %v1162, 2
        %v1164 = vmax.f32 %v1162, %v1163
        %v1165 = vrot.slane %v1164, 1
        %v1166 = vmax.f32 %v1164, %v1165
        %v1167 = vsel %vm1033, %v943, -inf
        %v1168 = vrot.slane %v1167, 4
        %v1169 = vmax.f32 %v1167, %v1168
        %v1170 = vrot.slane %v1169, 2
        %v1171 = vmax.f32 %v1169, %v1170
        %v1172 = vrot.slane %v1171, 1
        %v1173 = vmax.f32 %v1171, %v1172
        %v1174 = vsel %vm1033, %v660, -inf
        %v1175 = vrot.slane %v1174, 4
        %v1176 = vmax.f32 %v1174, %v1175
        %v1177 = vrot.slane %v1176, 2
        %v1178 = vmax.f32 %v1176, %v1177
        %v1179 = vrot.slane %v1178, 1
        %v1180 = vmax.f32 %v1178, %v1179
        %v1181 = vsel %vm1033, %v803, -inf
        %v1182 = vrot.slane %v1181, 4
        %v1183 = vmax.f32 %v1181, %v1182
        %v1184 = vrot.slane %v1183, 2
        %v1185 = vmax.f32 %v1183, %v1184
        %v1186 = vrot.slane %v1185, 1
        %v1187 = vmax.f32 %v1185, %v1186
        %v1188 = vsel %vm1033, %v944, -inf
        %v1189 = vrot.slane %v1188, 4
        %v1190 = vmax.f32 %v1188, %v1189
        %v1191 = vrot.slane %v1190, 2
        %v1192 = vmax.f32 %v1190, %v1191
        %v1193 = vrot.slane %v1192, 1
        %v1194 = vmax.f32 %v1192, %v1193
        %v1195 = vsel %vm1033, %v804, -inf
        %v1196 = vrot.slane %v1195, 4
        %v1197 = vmax.f32 %v1195, %v1196
        %v1198 = vrot.slane %v1197, 2
        %v1199 = vmax.f32 %v1197, %v1198
        %v1200 = vrot.slane %v1199, 1
        %v1201 = vmax.f32 %v1199, %v1200
        %v1202 = vsel %vm1033, %v805, -inf
        %v1203 = vrot.slane %v1202, 4
        %v1204 = vmax.f32 %v1202, %v1203
        %v1205 = vrot.slane %v1204, 2
        %v1206 = vmax.f32 %v1204, %v1205
        %v1207 = vrot.slane %v1206, 1
        %v1208 = vmax.f32 %v1206, %v1207
        %v1209 = vsel %vm1033, %v945, -inf
        %v1210 = vrot.slane %v1209, 4
        %v1211 = vmax.f32 %v1209, %v1210
        %v1212 = vrot.slane %v1211, 2
        %v1213 = vmax.f32 %v1211, %v1212
        %v1214 = vrot.slane %v1213, 1
        %v1215 = vmax.f32 %v1213, %v1214
        %v1216 = vsel %vm1033, %v663, -inf
        %v1217 = vrot.slane %v1216, 4
        %v1218 = vmax.f32 %v1216, %v1217
        %v1219 = vrot.slane %v1218, 2
        %v1220 = vmax.f32 %v1218, %v1219
        %v1221 = vrot.slane %v1220, 1
        %v1222 = vmax.f32 %v1220, %v1221
        %v1223 = vsel %vm1033, %v806, -inf
        %v1224 = vrot.slane %v1223, 4
        %v1225 = vmax.f32 %v1223, %v1224
        %v1226 = vrot.slane %v1225, 2
        %v1227 = vmax.f32 %v1225, %v1226
        %v1228 = vrot.slane %v1227, 1
        %v1229 = vmax.f32 %v1227, %v1228
        %v1230 = vsel %vm1033, %v946, -inf
        %v1231 = vrot.slane %v1230, 4
        %v1232 = vmax.f32 %v1230, %v1231
        %v1233 = vrot.slane %v1232, 2
        %v1234 = vmax.f32 %v1232, %v1233
        %v1235 = vrot.slane %v1234, 1
        %v1236 = vmax.f32 %v1234, %v1235
        %v1237 = vsel %vm1033, %v807, -inf
        %v1238 = vrot.slane %v1237, 4
        %v1239 = vmax.f32 %v1237, %v1238
        %v1240 = vrot.slane %v1239, 2
        %v1241 = vmax.f32 %v1239, %v1240
        %v1242 = vrot.slane %v1241, 1
        %v1243 = vmax.f32 %v1241, %v1242
        %v1244 = vsel %vm1033, %v808, -inf
        %v1245 = vrot.slane %v1244, 4
        %v1246 = vmax.f32 %v1244, %v1245
        %v1247 = vrot.slane %v1246, 2
        %v1248 = vmax.f32 %v1246, %v1247
        %v1249 = vrot.slane %v1248, 1
        %v1250 = vmax.f32 %v1248, %v1249
        %v1251 = vsel %vm1033, %v947, -inf
        %v1252 = vrot.slane %v1251, 4
        %v1253 = vmax.f32 %v1251, %v1252
        %v1254 = vrot.slane %v1253, 2
        %v1255 = vmax.f32 %v1253, %v1254
        %v1256 = vrot.slane %v1255, 1
        %v1257 = vmax.f32 %v1255, %v1256
        %v1258 = vsel %vm1033, %v666, -inf
        %v1259 = vrot.slane %v1258, 4
        %v1260 = vmax.f32 %v1258, %v1259
        %v1261 = vrot.slane %v1260, 2
        %v1262 = vmax.f32 %v1260, %v1261
        %v1263 = vrot.slane %v1262, 1
        %v1264 = vmax.f32 %v1262, %v1263
        %v1265 = vsel %vm1033, %v809, -inf
        %v1266 = vrot.slane %v1265, 4
        %v1267 = vmax.f32 %v1265, %v1266
        %v1268 = vrot.slane %v1267, 2
        %v1269 = vmax.f32 %v1267, %v1268
        %v1270 = vrot.slane %v1269, 1
        %v1271 = vmax.f32 %v1269, %v1270
        %v1272 = vsel %vm1033, %v948, -inf
        %v1273 = vrot.slane %v1272, 4
        %v1274 = vmax.f32 %v1272, %v1273
        %v1275 = vrot.slane %v1274, 2
        %v1276 = vmax.f32 %v1274, %v1275
        %v1277 = vrot.slane %v1276, 1
        %v1278 = vmax.f32 %v1276, %v1277
        %v1279 = vsel %vm1033, %v810, -inf
        %v1280 = vrot.slane %v1279, 4
        %v1281 = vmax.f32 %v1279, %v1280
        %v1282 = vrot.slane %v1281, 2
        %v1283 = vmax.f32 %v1281, %v1282
        %v1284 = vrot.slane %v1283, 1
        %v1285 = vmax.f32 %v1283, %v1284
        %v1286 = vsel %vm1033, %v811, -inf
        %v1287 = vrot.slane %v1286, 4
        %v1288 = vmax.f32 %v1286, %v1287
        %v1289 = vrot.slane %v1288, 2
        %v1290 = vmax.f32 %v1288, %v1289
        %v1291 = vrot.slane %v1290, 1
        %v1292 = vmax.f32 %v1290, %v1291
        %v1293 = vsel %vm1033, %v949, -inf
        %v1294 = vrot.slane %v1293, 4
        %v1295 = vmax.f32 %v1293, %v1294
        %v1296 = vrot.slane %v1295, 2
        %v1297 = vmax.f32 %v1295, %v1296
        %v1298 = vrot.slane %v1297, 1
        %v1299 = vmax.f32 %v1297, %v1298
        %v1300 = vsel %vm1033, %v669, -inf
        %v1301 = vrot.slane %v1300, 4
        %v1302 = vmax.f32 %v1300, %v1301
        %v1303 = vrot.slane %v1302, 2
        %v1304 = vmax.f32 %v1302, %v1303
        %v1305 = vrot.slane %v1304, 1
        %v1306 = vmax.f32 %v1304, %v1305
        %v1307 = vsel %vm1033, %v812, -inf
        %v1308 = vrot.slane %v1307, 4
        %v1309 = vmax.f32 %v1307, %v1308
        %v1310 = vrot.slane %v1309, 2
        %v1311 = vmax.f32 %v1309, %v1310
        %v1312 = vrot.slane %v1311, 1
        %v1313 = vmax.f32 %v1311, %v1312
        %v1314 = vsel %vm1033, %v950, -inf
        %v1315 = vrot.slane %v1314, 4
        %v1316 = vmax.f32 %v1314, %v1315
        %v1317 = vrot.slane %v1316, 2
        %v1318 = vmax.f32 %v1316, %v1317
        %v1319 = vrot.slane %v1318, 1
        %v1320 = vmax.f32 %v1318, %v1319
        %v1321 = vsel %vm1033, %v813, -inf
        %v1322 = vrot.slane %v1321, 4
        %v1323 = vmax.f32 %v1321, %v1322
        %v1324 = vrot.slane %v1323, 2
        %v1325 = vmax.f32 %v1323, %v1324
        %v1326 = vrot.slane %v1325, 1
        %v1327 = vmax.f32 %v1325, %v1326
        %v1328 = vsel %vm1033, %v814, -inf
        %v1329 = vrot.slane %v1328, 4
        %v1330 = vmax.f32 %v1328, %v1329
        %v1331 = vrot.slane %v1330, 2
        %v1332 = vmax.f32 %v1330, %v1331
        %v1333 = vrot.slane %v1332, 1
        %v1334 = vmax.f32 %v1332, %v1333
        %v1335 = vsel %vm1033, %v951, -inf
        %v1336 = vrot.slane %v1335, 4
        %v1337 = vmax.f32 %v1335, %v1336
        %v1338 = vrot.slane %v1337, 2
        %v1339 = vmax.f32 %v1337, %v1338
        %v1340 = vrot.slane %v1339, 1
        %v1341 = vmax.f32 %v1339, %v1340
        %v1342 = vsel %vm1033, %v672, -inf
        %v1343 = vrot.slane %v1342, 4
        %v1344 = vmax.f32 %v1342, %v1343
        %v1345 = vrot.slane %v1344, 2
        %v1346 = vmax.f32 %v1344, %v1345
        %v1347 = vrot.slane %v1346, 1
        %v1348 = vmax.f32 %v1346, %v1347
        %v1349 = vsel %vm1033, %v815, -inf
        %v1350 = vrot.slane %v1349, 4
        %v1351 = vmax.f32 %v1349, %v1350
        %v1352 = vrot.slane %v1351, 2
        %v1353 = vmax.f32 %v1351, %v1352
        %v1354 = vrot.slane %v1353, 1
        %v1355 = vmax.f32 %v1353, %v1354
        %v1356 = vsel %vm1033, %v952, -inf
        %v1357 = vrot.slane %v1356, 4
        %v1358 = vmax.f32 %v1356, %v1357
        %v1359 = vrot.slane %v1358, 2
        %v1360 = vmax.f32 %v1358, %v1359
        %v1361 = vrot.slane %v1360, 1
        %v1362 = vmax.f32 %v1360, %v1361
        %v1363 = vsel %vm1033, %v816, -inf
        %v1364 = vrot.slane %v1363, 4
        %v1365 = vmax.f32 %v1363, %v1364
        %v1366 = vrot.slane %v1365, 2
        %v1367 = vmax.f32 %v1365, %v1366
        %v1368 = vrot.slane %v1367, 1
        %v1369 = vmax.f32 %v1367, %v1368
        %v1370 = vsel %vm1033, %v817, -inf
        %v1371 = vrot.slane %v1370, 4
        %v1372 = vmax.f32 %v1370, %v1371
        %v1373 = vrot.slane %v1372, 2
        %v1374 = vmax.f32 %v1372, %v1373
        %v1375 = vrot.slane %v1374, 1
        %v1376 = vmax.f32 %v1374, %v1375
        %v1377 = vsel %vm1033, %v953, -inf
        %v1378 = vrot.slane %v1377, 4
        %v1379 = vmax.f32 %v1377, %v1378
        %v1380 = vrot.slane %v1379, 2
        %v1381 = vmax.f32 %v1379, %v1380
        %v1382 = vrot.slane %v1381, 1
        %v1383 = vmax.f32 %v1381, %v1382
        %v1384 = vsel %vm1033, %v675, -inf
        %v1385 = vrot.slane %v1384, 4
        %v1386 = vmax.f32 %v1384, %v1385
        %v1387 = vrot.slane %v1386, 2
        %v1388 = vmax.f32 %v1386, %v1387
        %v1389 = vrot.slane %v1388, 1
        %v1390 = vmax.f32 %v1388, %v1389
        %v1391 = vsel %vm1033, %v818, -inf
        %v1392 = vrot.slane %v1391, 4
        %v1393 = vmax.f32 %v1391, %v1392
        %v1394 = vrot.slane %v1393, 2
        %v1395 = vmax.f32 %v1393, %v1394
        %v1396 = vrot.slane %v1395, 1
        %v1397 = vmax.f32 %v1395, %v1396
        %v1398 = vsel %vm1033, %v954, -inf
        %v1399 = vrot.slane %v1398, 4
        %v1400 = vmax.f32 %v1398, %v1399
        %v1401 = vrot.slane %v1400, 2
        %v1402 = vmax.f32 %v1400, %v1401
        %v1403 = vrot.slane %v1402, 1
        %v1404 = vmax.f32 %v1402, %v1403
        %v1405 = vsel %vm1033, %v819, -inf
        %v1406 = vrot.slane %v1405, 4
        %v1407 = vmax.f32 %v1405, %v1406
        %v1408 = vrot.slane %v1407, 2
        %v1409 = vmax.f32 %v1407, %v1408
        %v1410 = vrot.slane %v1409, 1
        %v1411 = vmax.f32 %v1409, %v1410
        %v1412 = vsel %vm1033, %v820, -inf
        %v1413 = vrot.slane %v1412, 4
        %v1414 = vmax.f32 %v1412, %v1413
        %v1415 = vrot.slane %v1414, 2
        %v1416 = vmax.f32 %v1414, %v1415
        %v1417 = vrot.slane %v1416, 1
        %v1418 = vmax.f32 %v1416, %v1417
        %v1419 = vsel %vm1033, %v955, -inf
        %v1420 = vrot.slane %v1419, 4
        %v1421 = vmax.f32 %v1419, %v1420
        %v1422 = vrot.slane %v1421, 2
        %v1423 = vmax.f32 %v1421, %v1422
        %v1424 = vrot.slane %v1423, 1
        %v1425 = vmax.f32 %v1423, %v1424
        %v1426 = vsel %vm1033, %v678, -inf
        %v1427 = vrot.slane %v1426, 4
        %v1428 = vmax.f32 %v1426, %v1427
        %v1429 = vrot.slane %v1428, 2
        %v1430 = vmax.f32 %v1428, %v1429
        %v1431 = vrot.slane %v1430, 1
        %v1432 = vmax.f32 %v1430, %v1431
        %v1433 = vsel %vm1033, %v821, -inf
        %v1434 = vrot.slane %v1433, 4
        %v1435 = vmax.f32 %v1433, %v1434
        %v1436 = vrot.slane %v1435, 2
        %v1437 = vmax.f32 %v1435, %v1436
        %v1438 = vrot.slane %v1437, 1
        %v1439 = vmax.f32 %v1437, %v1438
        %v1440 = vsel %vm1033, %v956, -inf
        %v1441 = vrot.slane %v1440, 4
        %v1442 = vmax.f32 %v1440, %v1441
        %v1443 = vrot.slane %v1442, 2
        %v1444 = vmax.f32 %v1442, %v1443
        %v1445 = vrot.slane %v1444, 1
        %v1446 = vmax.f32 %v1444, %v1445
        %v1447 = vsel %vm1033, %v822, -inf
        %v1448 = vrot.slane %v1447, 4
        %v1449 = vmax.f32 %v1447, %v1448
        %v1450 = vrot.slane %v1449, 2
        %v1451 = vmax.f32 %v1449, %v1450
        %v1452 = vrot.slane %v1451, 1
        %v1453 = vmax.f32 %v1451, %v1452
        %v1454 = vsel %vm1033, %v823, -inf
        %v1455 = vrot.slane %v1454, 4
        %v1456 = vmax.f32 %v1454, %v1455
        %v1457 = vrot.slane %v1456, 2
        %v1458 = vmax.f32 %v1456, %v1457
        %v1459 = vrot.slane %v1458, 1
        %v1460 = vmax.f32 %v1458, %v1459
        %v1461 = vsel %vm1033, %v957, -inf
        %v1462 = vrot.slane %v1461, 4
        %v1463 = vmax.f32 %v1461, %v1462
        %v1464 = vrot.slane %v1463, 2
        %v1465 = vmax.f32 %v1463, %v1464
        %v1466 = vrot.slane %v1465, 1
        %v1467 = vmax.f32 %v1465, %v1466
        %v1468 = vsel %vm1033, %v681, -inf
        %v1469 = vrot.slane %v1468, 4
        %v1470 = vmax.f32 %v1468, %v1469
        %v1471 = vrot.slane %v1470, 2
        %v1472 = vmax.f32 %v1470, %v1471
        %v1473 = vrot.slane %v1472, 1
        %v1474 = vmax.f32 %v1472, %v1473
        %v1475 = vsel %vm1033, %v824, -inf
        %v1476 = vrot.slane %v1475, 4
        %v1477 = vmax.f32 %v1475, %v1476
        %v1478 = vrot.slane %v1477, 2
        %v1479 = vmax.f32 %v1477, %v1478
        %v1480 = vrot.slane %v1479, 1
        %v1481 = vmax.f32 %v1479, %v1480
        %v1482 = vsel %vm1033, %v958, -inf
        %v1483 = vrot.slane %v1482, 4
        %v1484 = vmax.f32 %v1482, %v1483
        %v1485 = vrot.slane %v1484, 2
        %v1486 = vmax.f32 %v1484, %v1485
        %v1487 = vrot.slane %v1486, 1
        %v1488 = vmax.f32 %v1486, %v1487
        %v1489 = vsel %vm1033, %v825, -inf
        %v1490 = vrot.slane %v1489, 4
        %v1491 = vmax.f32 %v1489, %v1490
        %v1492 = vrot.slane %v1491, 2
        %v1493 = vmax.f32 %v1491, %v1492
        %v1494 = vrot.slane %v1493, 1
        %v1495 = vmax.f32 %v1493, %v1494
        %v1496 = vsel %vm1033, %v826, -inf
        %v1497 = vrot.slane %v1496, 4
        %v1498 = vmax.f32 %v1496, %v1497
        %v1499 = vrot.slane %v1498, 2
        %v1500 = vmax.f32 %v1498, %v1499
        %v1501 = vrot.slane %v1500, 1
        %v1502 = vmax.f32 %v1500, %v1501
        %v1503 = vsel %vm1033, %v959, -inf
        %v1504 = vrot.slane %v1503, 4
        %v1505 = vmax.f32 %v1503, %v1504
        %v1506 = vrot.slane %v1505, 2
        %v1507 = vmax.f32 %v1505, %v1506
        %v1508 = vrot.slane %v1507, 1
        %v1509 = vmax.f32 %v1507, %v1508
        %v1510 = vsel %vm1033, %v684, -inf
        %v1511 = vrot.slane %v1510, 4
        %v1512 = vmax.f32 %v1510, %v1511
        %v1513 = vrot.slane %v1512, 2
        %v1514 = vmax.f32 %v1512, %v1513
        %v1515 = vrot.slane %v1514, 1
        %v1516 = vmax.f32 %v1514, %v1515
        %v1517 = vsel %vm1033, %v827, -inf
        %v1518 = vrot.slane %v1517, 4
        %v1519 = vmax.f32 %v1517, %v1518
        %v1520 = vrot.slane %v1519, 2
        %v1521 = vmax.f32 %v1519, %v1520
        %v1522 = vrot.slane %v1521, 1
        %v1523 = vmax.f32 %v1521, %v1522
        %v1524 = vsel %vm1033, %v960, -inf
        %v1525 = vrot.slane %v1524, 4
        %v1526 = vmax.f32 %v1524, %v1525
        %v1527 = vrot.slane %v1526, 2
        %v1528 = vmax.f32 %v1526, %v1527
        %v1529 = vrot.slane %v1528, 1
        %v1530 = vmax.f32 %v1528, %v1529
        %v1531 = vsel %vm1033, %v828, -inf
        %v1532 = vrot.slane %v1531, 4
        %v1533 = vmax.f32 %v1531, %v1532
        %v1534 = vrot.slane %v1533, 2
        %v1535 = vmax.f32 %v1533, %v1534
        %v1536 = vrot.slane %v1535, 1
        %v1537 = vmax.f32 %v1535, %v1536
        %v1538 = vsel %vm1033, %v829, -inf
        %v1539 = vrot.slane %v1538, 4
        %v1540 = vmax.f32 %v1538, %v1539
        %v1541 = vrot.slane %v1540, 2
        %v1542 = vmax.f32 %v1540, %v1541
        %v1543 = vrot.slane %v1542, 1
        %v1544 = vmax.f32 %v1542, %v1543
        %v1545 = vsel %vm1033, %v961, -inf
        %v1546 = vrot.slane %v1545, 4
        %v1547 = vmax.f32 %v1545, %v1546
        %v1548 = vrot.slane %v1547, 2
        %v1549 = vmax.f32 %v1547, %v1548
        %v1550 = vrot.slane %v1549, 1
        %v1551 = vmax.f32 %v1549, %v1550
        %v1552 = vsel %vm1033, %v687, -inf
        %v1553 = vrot.slane %v1552, 4
        %v1554 = vmax.f32 %v1552, %v1553
        %v1555 = vrot.slane %v1554, 2
        %v1556 = vmax.f32 %v1554, %v1555
        %v1557 = vrot.slane %v1556, 1
        %v1558 = vmax.f32 %v1556, %v1557
        %v1559 = vsel %vm1033, %v830, -inf
        %v1560 = vrot.slane %v1559, 4
        %v1561 = vmax.f32 %v1559, %v1560
        %v1562 = vrot.slane %v1561, 2
        %v1563 = vmax.f32 %v1561, %v1562
        %v1564 = vrot.slane %v1563, 1
        %v1565 = vmax.f32 %v1563, %v1564
        %v1566 = vsel %vm1033, %v962, -inf
        %v1567 = vrot.slane %v1566, 4
        %v1568 = vmax.f32 %v1566, %v1567
        %v1569 = vrot.slane %v1568, 2
        %v1570 = vmax.f32 %v1568, %v1569
        %v1571 = vrot.slane %v1570, 1
        %v1572 = vmax.f32 %v1570, %v1571
        %v1573 = vsel %vm1033, %v831, -inf
        %v1574 = vrot.slane %v1573, 4
        %v1575 = vmax.f32 %v1573, %v1574
        %v1576 = vrot.slane %v1575, 2
        %v1577 = vmax.f32 %v1575, %v1576
        %v1578 = vrot.slane %v1577, 1
        %v1579 = vmax.f32 %v1577, %v1578
        %v1580 = vsel %vm1033, %v832, -inf
        %v1581 = vrot.slane %v1580, 4
        %v1582 = vmax.f32 %v1580, %v1581
        %v1583 = vrot.slane %v1582, 2
        %v1584 = vmax.f32 %v1582, %v1583
        %v1585 = vrot.slane %v1584, 1
        %v1586 = vmax.f32 %v1584, %v1585
        %v1587 = vsel %vm1033, %v963, -inf
        %v1588 = vrot.slane %v1587, 4
        %v1589 = vmax.f32 %v1587, %v1588
        %v1590 = vrot.slane %v1589, 2
        %v1591 = vmax.f32 %v1589, %v1590
        %v1592 = vrot.slane %v1591, 1
        %v1593 = vmax.f32 %v1591, %v1592
        %v1594 = vsel %vm1033, %v690, -inf
        %v1595 = vrot.slane %v1594, 4
        %v1596 = vmax.f32 %v1594, %v1595
        %v1597 = vrot.slane %v1596, 2
        %v1598 = vmax.f32 %v1596, %v1597
        %v1599 = vrot.slane %v1598, 1
        %v1600 = vmax.f32 %v1598, %v1599
        %v1601 = vsel %vm1033, %v833, -inf
        %v1602 = vrot.slane %v1601, 4
        %v1603 = vmax.f32 %v1601, %v1602
        %v1604 = vrot.slane %v1603, 2
        %v1605 = vmax.f32 %v1603, %v1604
        %v1606 = vrot.slane %v1605, 1
        %v1607 = vmax.f32 %v1605, %v1606
        %v1608 = vsel %vm1033, %v964, -inf
        %v1609 = vrot.slane %v1608, 4
        %v1610 = vmax.f32 %v1608, %v1609
        %v1611 = vrot.slane %v1610, 2
        %v1612 = vmax.f32 %v1610, %v1611
        %v1613 = vrot.slane %v1612, 1
        %v1614 = vmax.f32 %v1612, %v1613
        %v1615 = vsel %vm1033, %v834, -inf
        %v1616 = vrot.slane %v1615, 4
        %v1617 = vmax.f32 %v1615, %v1616
        %v1618 = vrot.slane %v1617, 2
        %v1619 = vmax.f32 %v1617, %v1618
        %v1620 = vrot.slane %v1619, 1
        %v1621 = vmax.f32 %v1619, %v1620
        %v1622 = vsel %vm1033, %v835, -inf
        %v1623 = vrot.slane %v1622, 4
        %v1624 = vmax.f32 %v1622, %v1623
        %v1625 = vrot.slane %v1624, 2
        %v1626 = vmax.f32 %v1624, %v1625
        %v1627 = vrot.slane %v1626, 1
        %v1628 = vmax.f32 %v1626, %v1627
        %v1629 = vsel %vm1033, %v965, -inf
        %v1630 = vrot.slane %v1629, 4
        %v1631 = vmax.f32 %v1629, %v1630
        %v1632 = vrot.slane %v1631, 2
        %v1633 = vmax.f32 %v1631, %v1632
        %v1634 = vrot.slane %v1633, 1
        %v1635 = vmax.f32 %v1633, %v1634
        %v1636 = vsel %vm1033, %v693, -inf
        %v1637 = vrot.slane %v1636, 4
        %v1638 = vmax.f32 %v1636, %v1637
        %v1639 = vrot.slane %v1638, 2
        %v1640 = vmax.f32 %v1638, %v1639
        %v1641 = vrot.slane %v1640, 1
        %v1642 = vmax.f32 %v1640, %v1641
        %v1643 = vsel %vm1033, %v836, -inf
        %v1644 = vrot.slane %v1643, 4
        %v1645 = vmax.f32 %v1643, %v1644
        %v1646 = vrot.slane %v1645, 2
        %v1647 = vmax.f32 %v1645, %v1646
        %v1648 = vrot.slane %v1647, 1
        %v1649 = vmax.f32 %v1647, %v1648
        %v1650 = vsel %vm1033, %v966, -inf
        %v1651 = vrot.slane %v1650, 4
        %v1652 = vmax.f32 %v1650, %v1651
        %v1653 = vrot.slane %v1652, 2
        %v1654 = vmax.f32 %v1652, %v1653
        %v1655 = vrot.slane %v1654, 1
        %v1656 = vmax.f32 %v1654, %v1655
        %v1657 = vsel %vm1033, %v837, -inf
        %v1658 = vrot.slane %v1657, 4
        %v1659 = vmax.f32 %v1657, %v1658
        %v1660 = vrot.slane %v1659, 2
        %v1661 = vmax.f32 %v1659, %v1660
        %v1662 = vrot.slane %v1661, 1
        %v1663 = vmax.f32 %v1661, %v1662
        %v1664 = vsel %vm1033, %v838, -inf
        %v1665 = vrot.slane %v1664, 4
        %v1666 = vmax.f32 %v1664, %v1665
        %v1667 = vrot.slane %v1666, 2
        %v1668 = vmax.f32 %v1666, %v1667
        %v1669 = vrot.slane %v1668, 1
        %v1670 = vmax.f32 %v1668, %v1669
        %v1671 = vsel %vm1033, %v967, -inf
        %v1672 = vrot.slane %v1671, 4
        %v1673 = vmax.f32 %v1671, %v1672
        %v1674 = vrot.slane %v1673, 2
        %v1675 = vmax.f32 %v1673, %v1674
        %v1676 = vrot.slane %v1675, 1
        %v1677 = vmax.f32 %v1675, %v1676
        %v1678 = vsel %vm1033, %v696, -inf
        %v1679 = vrot.slane %v1678, 4
        %v1680 = vmax.f32 %v1678, %v1679
        %v1681 = vrot.slane %v1680, 2
        %v1682 = vmax.f32 %v1680, %v1681
        %v1683 = vrot.slane %v1682, 1
        %v1684 = vmax.f32 %v1682, %v1683
        %v1685 = vsel %vm1033, %v839, -inf
        %v1686 = vrot.slane %v1685, 4
        %v1687 = vmax.f32 %v1685, %v1686
        %v1688 = vrot.slane %v1687, 2
        %v1689 = vmax.f32 %v1687, %v1688
        %v1690 = vrot.slane %v1689, 1
        %v1691 = vmax.f32 %v1689, %v1690
        %v1692 = vsel %vm1033, %v968, -inf
        %v1693 = vrot.slane %v1692, 4
        %v1694 = vmax.f32 %v1692, %v1693
        %v1695 = vrot.slane %v1694, 2
        %v1696 = vmax.f32 %v1694, %v1695
        %v1697 = vrot.slane %v1696, 1
        %v1698 = vmax.f32 %v1696, %v1697
        %v1699 = vsel %vm1033, %v840, -inf
        %v1700 = vrot.slane %v1699, 4
        %v1701 = vmax.f32 %v1699, %v1700
        %v1702 = vrot.slane %v1701, 2
        %v1703 = vmax.f32 %v1701, %v1702
        %v1704 = vrot.slane %v1703, 1
        %v1705 = vmax.f32 %v1703, %v1704
        %v1706 = vsel %vm1033, %v841, -inf
        %v1707 = vrot.slane %v1706, 4
        %v1708 = vmax.f32 %v1706, %v1707
        %v1709 = vrot.slane %v1708, 2
        %v1710 = vmax.f32 %v1708, %v1709
        %v1711 = vrot.slane %v1710, 1
        %v1712 = vmax.f32 %v1710, %v1711
        %v1713 = vsel %vm1033, %v969, -inf
        %v1714 = vrot.slane %v1713, 4
        %v1715 = vmax.f32 %v1713, %v1714
        %v1716 = vrot.slane %v1715, 2
        %v1717 = vmax.f32 %v1715, %v1716
        %v1718 = vrot.slane %v1717, 1
        %v1719 = vmax.f32 %v1717, %v1718
        %v1720 = vsel %vm1033, %v699, -inf
        %v1721 = vrot.slane %v1720, 4
        %v1722 = vmax.f32 %v1720, %v1721
        %v1723 = vrot.slane %v1722, 2
        %v1724 = vmax.f32 %v1722, %v1723
        %v1725 = vrot.slane %v1724, 1
        %v1726 = vmax.f32 %v1724, %v1725
        %v1727 = vsel %vm1033, %v842, -inf
        %v1728 = vrot.slane %v1727, 4
        %v1729 = vmax.f32 %v1727, %v1728
        %v1730 = vrot.slane %v1729, 2
        %v1731 = vmax.f32 %v1729, %v1730
        %v1732 = vrot.slane %v1731, 1
        %v1733 = vmax.f32 %v1731, %v1732
        %v1734 = vsel %vm1033, %v970, -inf
        %v1735 = vrot.slane %v1734, 4
        %v1736 = vmax.f32 %v1734, %v1735
        %v1737 = vrot.slane %v1736, 2
        %v1738 = vmax.f32 %v1736, %v1737
        %v1739 = vrot.slane %v1738, 1
        %v1740 = vmax.f32 %v1738, %v1739
        %v1741 = vsel %vm1033, %v843, -inf
        %v1742 = vrot.slane %v1741, 4
        %v1743 = vmax.f32 %v1741, %v1742
        %v1744 = vrot.slane %v1743, 2
        %v1745 = vmax.f32 %v1743, %v1744
        %v1746 = vrot.slane %v1745, 1
        %v1747 = vmax.f32 %v1745, %v1746
        %v1748 = vsel %vm1033, %v844, -inf
        %v1749 = vrot.slane %v1748, 4
        %v1750 = vmax.f32 %v1748, %v1749
        %v1751 = vrot.slane %v1750, 2
        %v1752 = vmax.f32 %v1750, %v1751
        %v1753 = vrot.slane %v1752, 1
        %v1754 = vmax.f32 %v1752, %v1753
        %v1755 = vsel %vm1033, %v971, -inf
        %v1756 = vrot.slane %v1755, 4
        %v1757 = vmax.f32 %v1755, %v1756
        %v1758 = vrot.slane %v1757, 2
        %v1759 = vmax.f32 %v1757, %v1758
        %v1760 = vrot.slane %v1759, 1
        %v1761 = vmax.f32 %v1759, %v1760
        %v1762 = vsel %vm1033, %v702, -inf
        %v1763 = vrot.slane %v1762, 4
        %v1764 = vmax.f32 %v1762, %v1763
        %v1765 = vrot.slane %v1764, 2
        %v1766 = vmax.f32 %v1764, %v1765
        %v1767 = vrot.slane %v1766, 1
        %v1768 = vmax.f32 %v1766, %v1767
        %v1769 = vsel %vm1033, %v845, -inf
        %v1770 = vrot.slane %v1769, 4
        %v1771 = vmax.f32 %v1769, %v1770
        %v1772 = vrot.slane %v1771, 2
        %v1773 = vmax.f32 %v1771, %v1772
        %v1774 = vrot.slane %v1773, 1
        %v1775 = vmax.f32 %v1773, %v1774
        %v1776 = vsel %vm1033, %v972, -inf
        %v1777 = vrot.slane %v1776, 4
        %v1778 = vmax.f32 %v1776, %v1777
        %v1779 = vrot.slane %v1778, 2
        %v1780 = vmax.f32 %v1778, %v1779
        %v1781 = vrot.slane %v1780, 1
        %v1782 = vmax.f32 %v1780, %v1781
        %v1783 = vsel %vm1033, %v846, -inf
        %v1784 = vrot.slane %v1783, 4
        %v1785 = vmax.f32 %v1783, %v1784
        %v1786 = vrot.slane %v1785, 2
        %v1787 = vmax.f32 %v1785, %v1786
        %v1788 = vrot.slane %v1787, 1
        %v1789 = vmax.f32 %v1787, %v1788
        %v1790 = vsel %vm1033, %v847, -inf
        %v1791 = vrot.slane %v1790, 4
        %v1792 = vmax.f32 %v1790, %v1791
        %v1793 = vrot.slane %v1792, 2
        %v1794 = vmax.f32 %v1792, %v1793
        %v1795 = vrot.slane %v1794, 1
        %v1796 = vmax.f32 %v1794, %v1795
        %v1797 = vsel %vm1033, %v973, -inf
        %v1798 = vrot.slane %v1797, 4
        %v1799 = vmax.f32 %v1797, %v1798
        %v1800 = vrot.slane %v1799, 2
        %v1801 = vmax.f32 %v1799, %v1800
        %v1802 = vrot.slane %v1801, 1
        %v1803 = vmax.f32 %v1801, %v1802
        %v1804 = vsel %vm1033, %v705, -inf
        %v1805 = vrot.slane %v1804, 4
        %v1806 = vmax.f32 %v1804, %v1805
        %v1807 = vrot.slane %v1806, 2
        %v1808 = vmax.f32 %v1806, %v1807
        %v1809 = vrot.slane %v1808, 1
        %v1810 = vmax.f32 %v1808, %v1809
        %v1811 = vsel %vm1033, %v848, -inf
        %v1812 = vrot.slane %v1811, 4
        %v1813 = vmax.f32 %v1811, %v1812
        %v1814 = vrot.slane %v1813, 2
        %v1815 = vmax.f32 %v1813, %v1814
        %v1816 = vrot.slane %v1815, 1
        %v1817 = vmax.f32 %v1815, %v1816
        %v1818 = vsel %vm1033, %v974, -inf
        %v1819 = vrot.slane %v1818, 4
        %v1820 = vmax.f32 %v1818, %v1819
        %v1821 = vrot.slane %v1820, 2
        %v1822 = vmax.f32 %v1820, %v1821
        %v1823 = vrot.slane %v1822, 1
        %v1824 = vmax.f32 %v1822, %v1823
        %v1825 = vsel %vm1033, %v849, -inf
        %v1826 = vrot.slane %v1825, 4
        %v1827 = vmax.f32 %v1825, %v1826
        %v1828 = vrot.slane %v1827, 2
        %v1829 = vmax.f32 %v1827, %v1828
        %v1830 = vrot.slane %v1829, 1
        %v1831 = vmax.f32 %v1829, %v1830
        %v1832 = vsel %vm1033, %v850, -inf
        %v1833 = vrot.slane %v1832, 4
        %v1834 = vmax.f32 %v1832, %v1833
        %v1835 = vrot.slane %v1834, 2
        %v1836 = vmax.f32 %v1834, %v1835
        %v1837 = vrot.slane %v1836, 1
        %v1838 = vmax.f32 %v1836, %v1837
        %v1839 = vsel %vm1033, %v975, -inf
        %v1840 = vrot.slane %v1839, 4
        %v1841 = vmax.f32 %v1839, %v1840
        %v1842 = vrot.slane %v1841, 2
        %v1843 = vmax.f32 %v1841, %v1842
        %v1844 = vrot.slane %v1843, 1
        %v1845 = vmax.f32 %v1843, %v1844
        %v1846 = vsel %vm1033, %v708, -inf
        %v1847 = vrot.slane %v1846, 4
        %v1848 = vmax.f32 %v1846, %v1847
        %v1849 = vrot.slane %v1848, 2
        %v1850 = vmax.f32 %v1848, %v1849
        %v1851 = vrot.slane %v1850, 1
        %v1852 = vmax.f32 %v1850, %v1851
        %v1853 = vsel %vm1033, %v851, -inf
        %v1854 = vrot.slane %v1853, 4
        %v1855 = vmax.f32 %v1853, %v1854
        %v1856 = vrot.slane %v1855, 2
        %v1857 = vmax.f32 %v1855, %v1856
        %v1858 = vrot.slane %v1857, 1
        %v1859 = vmax.f32 %v1857, %v1858
        %v1860 = vsel %vm1033, %v976, -inf
        %v1861 = vrot.slane %v1860, 4
        %v1862 = vmax.f32 %v1860, %v1861
        %v1863 = vrot.slane %v1862, 2
        %v1864 = vmax.f32 %v1862, %v1863
        %v1865 = vrot.slane %v1864, 1
        %v1866 = vmax.f32 %v1864, %v1865
        %v1867 = vsel %vm1033, %v852, -inf
        %v1868 = vrot.slane %v1867, 4
        %v1869 = vmax.f32 %v1867, %v1868
        %v1870 = vrot.slane %v1869, 2
        %v1871 = vmax.f32 %v1869, %v1870
        %v1872 = vrot.slane %v1871, 1
        %v1873 = vmax.f32 %v1871, %v1872
        %v1874 = vsel %vm1033, %v853, -inf
        %v1875 = vrot.slane %v1874, 4
        %v1876 = vmax.f32 %v1874, %v1875
        %v1877 = vrot.slane %v1876, 2
        %v1878 = vmax.f32 %v1876, %v1877
        %v1879 = vrot.slane %v1878, 1
        %v1880 = vmax.f32 %v1878, %v1879
        %v1881 = vsel %vm1033, %v977, -inf
        %v1882 = vrot.slane %v1881, 4
        %v1883 = vmax.f32 %v1881, %v1882
        %v1884 = vrot.slane %v1883, 2
        %v1885 = vmax.f32 %v1883, %v1884
        %v1886 = vrot.slane %v1885, 1
        %v1887 = vmax.f32 %v1885, %v1886
        %v1888 = vsel %vm1033, %v711, -inf
        %v1889 = vrot.slane %v1888, 4
        %v1890 = vmax.f32 %v1888, %v1889
        %v1891 = vrot.slane %v1890, 2
        %v1892 = vmax.f32 %v1890, %v1891
        %v1893 = vrot.slane %v1892, 1
        %v1894 = vmax.f32 %v1892, %v1893
        %v1895 = vsel %vm1033, %v854, -inf
        %v1896 = vrot.slane %v1895, 4
        %v1897 = vmax.f32 %v1895, %v1896
        %v1898 = vrot.slane %v1897, 2
        %v1899 = vmax.f32 %v1897, %v1898
        %v1900 = vrot.slane %v1899, 1
        %v1901 = vmax.f32 %v1899, %v1900
        %v1902 = vsel %vm1033, %v978, -inf
        %v1903 = vrot.slane %v1902, 4
        %v1904 = vmax.f32 %v1902, %v1903
        %v1905 = vrot.slane %v1904, 2
        %v1906 = vmax.f32 %v1904, %v1905
        %v1907 = vrot.slane %v1906, 1
        %v1908 = vmax.f32 %v1906, %v1907
        %v1909 = vsel %vm1033, %v855, -inf
        %v1910 = vrot.slane %v1909, 4
        %v1911 = vmax.f32 %v1909, %v1910
        %v1912 = vrot.slane %v1911, 2
        %v1913 = vmax.f32 %v1911, %v1912
        %v1914 = vrot.slane %v1913, 1
        %v1915 = vmax.f32 %v1913, %v1914
        %v1916 = vsel %vm1033, %v856, -inf
        %v1917 = vrot.slane %v1916, 4
        %v1918 = vmax.f32 %v1916, %v1917
        %v1919 = vrot.slane %v1918, 2
        %v1920 = vmax.f32 %v1918, %v1919
        %v1921 = vrot.slane %v1920, 1
        %v1922 = vmax.f32 %v1920, %v1921
        %v1923 = vsel %vm1033, %v979, -inf
        %v1924 = vrot.slane %v1923, 4
        %v1925 = vmax.f32 %v1923, %v1924
        %v1926 = vrot.slane %v1925, 2
        %v1927 = vmax.f32 %v1925, %v1926
        %v1928 = vrot.slane %v1927, 1
        %v1929 = vmax.f32 %v1927, %v1928
        %v1930 = vsel %vm1033, %v714, -inf
        %v1931 = vrot.slane %v1930, 4
        %v1932 = vmax.f32 %v1930, %v1931
        %v1933 = vrot.slane %v1932, 2
        %v1934 = vmax.f32 %v1932, %v1933
        %v1935 = vrot.slane %v1934, 1
        %v1936 = vmax.f32 %v1934, %v1935
        %v1937 = vsel %vm1033, %v857, -inf
        %v1938 = vrot.slane %v1937, 4
        %v1939 = vmax.f32 %v1937, %v1938
        %v1940 = vrot.slane %v1939, 2
        %v1941 = vmax.f32 %v1939, %v1940
        %v1942 = vrot.slane %v1941, 1
        %v1943 = vmax.f32 %v1941, %v1942
        %v1944 = vsel %vm1033, %v980, -inf
        %v1945 = vrot.slane %v1944, 4
        %v1946 = vmax.f32 %v1944, %v1945
        %v1947 = vrot.slane %v1946, 2
        %v1948 = vmax.f32 %v1946, %v1947
        %v1949 = vrot.slane %v1948, 1
        %v1950 = vmax.f32 %v1948, %v1949
        %v1951 = vsel %vm1033, %v858, -inf
        %v1952 = vrot.slane %v1951, 4
        %v1953 = vmax.f32 %v1951, %v1952
        %v1954 = vrot.slane %v1953, 2
        %v1955 = vmax.f32 %v1953, %v1954
        %v1956 = vrot.slane %v1955, 1
        %v1957 = vmax.f32 %v1955, %v1956
        %v1958 = vsel %vm1033, %v859, -inf
        %v1959 = vrot.slane %v1958, 4
        %v1960 = vmax.f32 %v1958, %v1959
        %v1961 = vrot.slane %v1960, 2
        %v1962 = vmax.f32 %v1960, %v1961
        %v1963 = vrot.slane %v1962, 1
        %v1964 = vmax.f32 %v1962, %v1963
        %v1965 = vsel %vm1033, %v981, -inf
        %v1966 = vrot.slane %v1965, 4
        %v1967 = vmax.f32 %v1965, %v1966
        %v1968 = vrot.slane %v1967, 2
        %v1969 = vmax.f32 %v1967, %v1968
        %v1970 = vrot.slane %v1969, 1
        %v1971 = vmax.f32 %v1969, %v1970
        %v1972 = vsel %vm1033, %v717, -inf
        %v1973 = vrot.slane %v1972, 4
        %v1974 = vmax.f32 %v1972, %v1973
        %v1975 = vrot.slane %v1974, 2
        %v1976 = vmax.f32 %v1974, %v1975
        %v1977 = vrot.slane %v1976, 1
        %v1978 = vmax.f32 %v1976, %v1977
        %v1979 = vsel %vm1033, %v860, -inf
        %v1980 = vrot.slane %v1979, 4
        %v1981 = vmax.f32 %v1979, %v1980
        %v1982 = vrot.slane %v1981, 2
        %v1983 = vmax.f32 %v1981, %v1982
        %v1984 = vrot.slane %v1983, 1
        %v1985 = vmax.f32 %v1983, %v1984
        %v1986 = vsel %vm1033, %v982, -inf
        %v1987 = vrot.slane %v1986, 4
        %v1988 = vmax.f32 %v1986, %v1987
        %v1989 = vrot.slane %v1988, 2
        %v1990 = vmax.f32 %v1988, %v1989
        %v1991 = vrot.slane %v1990, 1
        %v1992 = vmax.f32 %v1990, %v1991
        %v1993 = vsel %vm1033, %v861, -inf
        %v1994 = vrot.slane %v1993, 4
        %v1995 = vmax.f32 %v1993, %v1994
        %v1996 = vrot.slane %v1995, 2
        %v1997 = vmax.f32 %v1995, %v1996
        %v1998 = vrot.slane %v1997, 1
        %v1999 = vmax.f32 %v1997, %v1998
        %v2000 = vsel %vm1033, %v862, -inf
        %v2001 = vrot.slane %v2000, 4
        %v2002 = vmax.f32 %v2000, %v2001
        %v2003 = vrot.slane %v2002, 2
        %v2004 = vmax.f32 %v2002, %v2003
        %v2005 = vrot.slane %v2004, 1
        %v2006 = vmax.f32 %v2004, %v2005
        %v2007 = vsel %vm1033, %v983, -inf
        %v2008 = vrot.slane %v2007, 4
        %v2009 = vmax.f32 %v2007, %v2008
        %v2010 = vrot.slane %v2009, 2
        %v2011 = vmax.f32 %v2009, %v2010
        %v2012 = vrot.slane %v2011, 1
        %v2013 = vmax.f32 %v2011, %v2012
        %v2014 = vsel %vm1033, %v720, -inf
        %v2015 = vrot.slane %v2014, 4
        %v2016 = vmax.f32 %v2014, %v2015
        %v2017 = vrot.slane %v2016, 2
        %v2018 = vmax.f32 %v2016, %v2017
        %v2019 = vrot.slane %v2018, 1
        %v2020 = vmax.f32 %v2018, %v2019
        %v2021 = vsel %vm1033, %v863, -inf
        %v2022 = vrot.slane %v2021, 4
        %v2023 = vmax.f32 %v2021, %v2022
        %v2024 = vrot.slane %v2023, 2
        %v2025 = vmax.f32 %v2023, %v2024
        %v2026 = vrot.slane %v2025, 1
        %v2027 = vmax.f32 %v2025, %v2026
        %v2028 = vsel %vm1033, %v984, -inf
        %v2029 = vrot.slane %v2028, 4
        %v2030 = vmax.f32 %v2028, %v2029
        %v2031 = vrot.slane %v2030, 2
        %v2032 = vmax.f32 %v2030, %v2031
        %v2033 = vrot.slane %v2032, 1
        %v2034 = vmax.f32 %v2032, %v2033
        %v2035 = vsel %vm1033, %v864, -inf
        %v2036 = vrot.slane %v2035, 4
        %v2037 = vmax.f32 %v2035, %v2036
        %v2038 = vrot.slane %v2037, 2
        %v2039 = vmax.f32 %v2037, %v2038
        %v2040 = vrot.slane %v2039, 1
        %v2041 = vmax.f32 %v2039, %v2040
        %v2042 = vpack.c.bf16 %v1040, %v1040
        %v2043 = vpack.c.bf16 %v1047, %v1047
        %v2044 = vpack.c.bf16 %v1054, %v1054
        %v2045 = vpack.c.bf16 %v1061, %v1061
        %v2046 = vpack.c.bf16 %v1068, %v1068
        %v2047 = vpack.c.bf16 %v1075, %v1075
        %v2048 = vpack.c.bf16 %v1082, %v1082
        %v2049 = vpack.c.bf16 %v1089, %v1089
        %v2050 = vpack.c.bf16 %v1096, %v1096
        %v2051 = vpack.c.bf16 %v1103, %v1103
        %v2052 = vpack.c.bf16 %v1110, %v1110
        %v2053 = vpack.c.bf16 %v1117, %v1117
        %v2054 = vpack.c.bf16 %v1124, %v1124
        %v2055 = vpack.c.bf16 %v1131, %v1131
        %v2056 = vpack.c.bf16 %v1138, %v1138
        %v2057 = vpack.c.bf16 %v1145, %v1145
        %v2058 = vpack.c.bf16 %v1152, %v1152
        %v2059 = vpack.c.bf16 %v1159, %v1159
        %v2060 = vpack.c.bf16 %v1166, %v1166
        %v2061 = vpack.c.bf16 %v1173, %v1173
        %v2062 = vpack.c.bf16 %v1180, %v1180
        %v2063 = vpack.c.bf16 %v1187, %v1187
        %v2064 = vpack.c.bf16 %v1194, %v1194
        %v2065 = vpack.c.bf16 %v1201, %v1201
        %v2066 = vpack.c.bf16 %v1208, %v1208
        %v2067 = vpack.c.bf16 %v1215, %v1215
        %v2068 = vpack.c.bf16 %v1222, %v1222
        %v2069 = vpack.c.bf16 %v1229, %v1229
        %v2070 = vpack.c.bf16 %v1236, %v1236
        %v2071 = vpack.c.bf16 %v1243, %v1243
        %v2072 = vpack.c.bf16 %v1250, %v1250
        %v2073 = vpack.c.bf16 %v1257, %v1257
        %v2074 = vpack.c.bf16 %v1264, %v1264
        %v2075 = vpack.c.bf16 %v1271, %v1271
        %v2076 = vpack.c.bf16 %v1278, %v1278
        %v2077 = vpack.c.bf16 %v1285, %v1285
        %v2078 = vpack.c.bf16 %v1292, %v1292
        %v2079 = vpack.c.bf16 %v1299, %v1299
        %v2080 = vpack.c.bf16 %v1306, %v1306
        %v2081 = vpack.c.bf16 %v1313, %v1313
        %v2082 = vpack.c.bf16 %v1320, %v1320
        %v2083 = vpack.c.bf16 %v1327, %v1327
        %v2084 = vpack.c.bf16 %v1334, %v1334
        %v2085 = vpack.c.bf16 %v1341, %v1341
        %v2086 = vpack.c.bf16 %v1348, %v1348
        %v2087 = vpack.c.bf16 %v1355, %v1355
        %v2088 = vpack.c.bf16 %v1362, %v1362
        %v2089 = vpack.c.bf16 %v1369, %v1369
        %v2090 = vpack.c.bf16 %v1376, %v1376
        %v2091 = vpack.c.bf16 %v1383, %v1383
        %v2092 = vpack.c.bf16 %v1390, %v1390
        %v2093 = vpack.c.bf16 %v1397, %v1397
        %v2094 = vpack.c.bf16 %v1404, %v1404
        %v2095 = vpack.c.bf16 %v1411, %v1411
        %v2096 = vpack.c.bf16 %v1418, %v1418
        %v2097 = vpack.c.bf16 %v1425, %v1425
        %v2098 = vpack.c.bf16 %v1432, %v1432
        %v2099 = vpack.c.bf16 %v1439, %v1439
        %v2100 = vpack.c.bf16 %v1446, %v1446
        %v2101 = vpack.c.bf16 %v1453, %v1453
        %v2102 = vpack.c.bf16 %v1460, %v1460
        %v2103 = vpack.c.bf16 %v1467, %v1467
        %v2104 = vpack.c.bf16 %v1474, %v1474
        %v2105 = vpack.c.bf16 %v1481, %v1481
        %v2106 = vpack.c.bf16 %v1488, %v1488
        %v2107 = vpack.c.bf16 %v1495, %v1495
        %v2108 = vpack.c.bf16 %v1502, %v1502
        %v2109 = vpack.c.bf16 %v1509, %v1509
        %v2110 = vpack.c.bf16 %v1516, %v1516
        %v2111 = vpack.c.bf16 %v1523, %v1523
        %v2112 = vpack.c.bf16 %v1530, %v1530
        %v2113 = vpack.c.bf16 %v1537, %v1537
        %v2114 = vpack.c.bf16 %v1544, %v1544
        %v2115 = vpack.c.bf16 %v1551, %v1551
        %v2116 = vpack.c.bf16 %v1558, %v1558
        %v2117 = vpack.c.bf16 %v1565, %v1565
        %v2118 = vpack.c.bf16 %v1572, %v1572
        %v2119 = vpack.c.bf16 %v1579, %v1579
        %v2120 = vpack.c.bf16 %v1586, %v1586
        %v2121 = vpack.c.bf16 %v1593, %v1593
        %v2122 = vpack.c.bf16 %v1600, %v1600
        %v2123 = vpack.c.bf16 %v1607, %v1607
        %v2124 = vpack.c.bf16 %v1614, %v1614
        %v2125 = vpack.c.bf16 %v1621, %v1621
        %v2126 = vpack.c.bf16 %v1628, %v1628
        %v2127 = vpack.c.bf16 %v1635, %v1635
        %v2128 = vpack.c.bf16 %v1642, %v1642
        %v2129 = vpack.c.bf16 %v1649, %v1649
        %v2130 = vpack.c.bf16 %v1656, %v1656
        %v2131 = vpack.c.bf16 %v1663, %v1663
        %v2132 = vpack.c.bf16 %v1670, %v1670
        %v2133 = vpack.c.bf16 %v1677, %v1677
        %v2134 = vpack.c.bf16 %v1684, %v1684
        %v2135 = vpack.c.bf16 %v1691, %v1691
        %v2136 = vpack.c.bf16 %v1698, %v1698
        %v2137 = vpack.c.bf16 %v1705, %v1705
        %v2138 = vpack.c.bf16 %v1712, %v1712
        %v2139 = vpack.c.bf16 %v1719, %v1719
        %v2140 = vpack.c.bf16 %v1726, %v1726
        %v2141 = vpack.c.bf16 %v1733, %v1733
        %v2142 = vpack.c.bf16 %v1740, %v1740
        %v2143 = vpack.c.bf16 %v1747, %v1747
        %v2144 = vpack.c.bf16 %v1754, %v1754
        %v2145 = vpack.c.bf16 %v1761, %v1761
        %v2146 = vpack.c.bf16 %v1768, %v1768
        %v2147 = vpack.c.bf16 %v1775, %v1775
        %v2148 = vpack.c.bf16 %v1782, %v1782
        %v2149 = vpack.c.bf16 %v1789, %v1789
        %v2150 = vpack.c.bf16 %v1796, %v1796
        %v2151 = vpack.c.bf16 %v1803, %v1803
        %v2152 = vpack.c.bf16 %v1810, %v1810
        %v2153 = vpack.c.bf16 %v1817, %v1817
        %v2154 = vpack.c.bf16 %v1824, %v1824
        %v2155 = vpack.c.bf16 %v1831, %v1831
        %v2156 = vpack.c.bf16 %v1838, %v1838
        %v2157 = vpack.c.bf16 %v1845, %v1845
        %v2158 = vpack.c.bf16 %v1852, %v1852
        %v2159 = vpack.c.bf16 %v1859, %v1859
        %v2160 = vpack.c.bf16 %v1866, %v1866
        %v2161 = vpack.c.bf16 %v1873, %v1873
        %v2162 = vpack.c.bf16 %v1880, %v1880
        %v2163 = vpack.c.bf16 %v1887, %v1887
        %v2164 = vpack.c.bf16 %v1894, %v1894
        %v2165 = vpack.c.bf16 %v1901, %v1901
        %v2166 = vpack.c.bf16 %v1908, %v1908
        %v2167 = vpack.c.bf16 %v1915, %v1915
        %v2168 = vpack.c.bf16 %v1922, %v1922
        %v2169 = vpack.c.bf16 %v1929, %v1929
        %v2170 = vpack.c.bf16 %v1936, %v1936
        %v2171 = vpack.c.bf16 %v1943, %v1943
        %v2172 = vpack.c.bf16 %v1950, %v1950
        %v2173 = vpack.c.bf16 %v1957, %v1957
        %v2174 = vpack.c.bf16 %v1964, %v1964
        %v2175 = vpack.c.bf16 %v1971, %v1971
        %v2176 = vpack.c.bf16 %v1978, %v1978
        %v2177 = vpack.c.bf16 %v1985, %v1985
        %v2178 = vpack.c.bf16 %v1992, %v1992
        %v2179 = vpack.c.bf16 %v1999, %v1999
        %v2180 = vpack.c.bf16 %v2006, %v2006
        %v2181 = vpack.c.bf16 %v2013, %v2013
        %v2182 = vpack.c.bf16 %v2020, %v2020
        %v2183 = vpack.c.bf16 %v2027, %v2027
        %v2184 = vpack.c.bf16 %v2034, %v2034
        %v2185 = vpack.c.bf16 %v2041, %v2041
        %v2330 = vunpack.c.l.b16 %v2042
        %v2331 = vunpack.c.l.b16 %v2043
        %v2332 = vunpack.c.l.b16 %v2044
        %v2333 = vunpack.c.l.b16 %v2045
        %v2334 = vunpack.c.l.b16 %v2046
        %v2335 = vunpack.c.l.b16 %v2047
        %v2336 = vunpack.c.l.b16 %v2048
        %v2337 = vunpack.c.l.b16 %v2049
        %v2338 = vunpack.c.l.b16 %v2050
        %v2339 = vunpack.c.l.b16 %v2051
        %v2340 = vunpack.c.l.b16 %v2052
        %v2341 = vunpack.c.l.b16 %v2053
        %v2342 = vunpack.c.l.b16 %v2054
        %v2343 = vunpack.c.l.b16 %v2055
        %v2344 = vunpack.c.l.b16 %v2056
        %v2345 = vunpack.c.l.b16 %v2057
        %v2346 = vunpack.c.l.b16 %v2058
        %v2347 = vunpack.c.l.b16 %v2059
        %v2348 = vunpack.c.l.b16 %v2060
        %v2349 = vunpack.c.l.b16 %v2061
        %v2350 = vunpack.c.l.b16 %v2062
        %v2351 = vunpack.c.l.b16 %v2063
        %v2352 = vunpack.c.l.b16 %v2064
        %v2353 = vunpack.c.l.b16 %v2065
        %v2354 = vunpack.c.l.b16 %v2066
        %v2355 = vunpack.c.l.b16 %v2067
        %v2356 = vunpack.c.l.b16 %v2068
        %v2357 = vunpack.c.l.b16 %v2069
        %v2358 = vunpack.c.l.b16 %v2070
        %v2359 = vunpack.c.l.b16 %v2071
        %v2360 = vunpack.c.l.b16 %v2072
        %v2361 = vunpack.c.l.b16 %v2073
        %v2362 = vunpack.c.l.b16 %v2074
        %v2363 = vunpack.c.l.b16 %v2075
        %v2364 = vunpack.c.l.b16 %v2076
        %v2365 = vunpack.c.l.b16 %v2077
        %v2366 = vunpack.c.l.b16 %v2078
        %v2367 = vunpack.c.l.b16 %v2079
        %v2368 = vunpack.c.l.b16 %v2080
        %v2369 = vunpack.c.l.b16 %v2081
        %v2370 = vunpack.c.l.b16 %v2082
        %v2371 = vunpack.c.l.b16 %v2083
        %v2372 = vunpack.c.l.b16 %v2084
        %v2373 = vunpack.c.l.b16 %v2085
        %v2374 = vunpack.c.l.b16 %v2086
        %v2375 = vunpack.c.l.b16 %v2087
        %v2376 = vunpack.c.l.b16 %v2088
        %v2377 = vunpack.c.l.b16 %v2089
        %v2378 = vunpack.c.l.b16 %v2090
        %v2379 = vunpack.c.l.b16 %v2091
        %v2380 = vunpack.c.l.b16 %v2092
        %v2381 = vunpack.c.l.b16 %v2093
        %v2382 = vunpack.c.l.b16 %v2094
        %v2383 = vunpack.c.l.b16 %v2095
        %v2384 = vunpack.c.l.b16 %v2096
        %v2385 = vunpack.c.l.b16 %v2097
        %v2386 = vunpack.c.l.b16 %v2098
        %v2387 = vunpack.c.l.b16 %v2099
        %v2388 = vunpack.c.l.b16 %v2100
        %v2389 = vunpack.c.l.b16 %v2101
        %v2390 = vunpack.c.l.b16 %v2102
        %v2391 = vunpack.c.l.b16 %v2103
        %v2392 = vunpack.c.l.b16 %v2104
        %v2393 = vunpack.c.l.b16 %v2105
        %v2394 = vunpack.c.l.b16 %v2106
        %v2395 = vunpack.c.l.b16 %v2107
        %v2396 = vunpack.c.l.b16 %v2108
        %v2397 = vunpack.c.l.b16 %v2109
        %v2398 = vunpack.c.l.b16 %v2110
        %v2399 = vunpack.c.l.b16 %v2111
        %v2400 = vunpack.c.l.b16 %v2112
        %v2401 = vunpack.c.l.b16 %v2113
        %v2402 = vunpack.c.l.b16 %v2114
        %v2403 = vunpack.c.l.b16 %v2115
        %v2404 = vunpack.c.l.b16 %v2116
        %v2405 = vunpack.c.l.b16 %v2117
        %v2406 = vunpack.c.l.b16 %v2118
        %v2407 = vunpack.c.l.b16 %v2119
        %v2408 = vunpack.c.l.b16 %v2120
        %v2409 = vunpack.c.l.b16 %v2121
        %v2410 = vunpack.c.l.b16 %v2122
        %v2411 = vunpack.c.l.b16 %v2123
        %v2412 = vunpack.c.l.b16 %v2124
        %v2413 = vunpack.c.l.b16 %v2125
        %v2414 = vunpack.c.l.b16 %v2126
        %v2415 = vunpack.c.l.b16 %v2127
        %v2416 = vunpack.c.l.b16 %v2128
        %v2417 = vunpack.c.l.b16 %v2129
        %v2418 = vunpack.c.l.b16 %v2130
        %v2419 = vunpack.c.l.b16 %v2131
        %v2420 = vunpack.c.l.b16 %v2132
        %v2421 = vunpack.c.l.b16 %v2133
        %v2422 = vunpack.c.l.b16 %v2134
        %v2423 = vunpack.c.l.b16 %v2135
        %v2424 = vunpack.c.l.b16 %v2136
        %v2425 = vunpack.c.l.b16 %v2137
        %v2426 = vunpack.c.l.b16 %v2138
        %v2427 = vunpack.c.l.b16 %v2139
        %v2428 = vunpack.c.l.b16 %v2140
        %v2429 = vunpack.c.l.b16 %v2141
        %v2430 = vunpack.c.l.b16 %v2142
        %v2431 = vunpack.c.l.b16 %v2143
        %v2432 = vunpack.c.l.b16 %v2144
        %v2433 = vunpack.c.l.b16 %v2145
        %v2434 = vunpack.c.l.b16 %v2146
        %v2435 = vunpack.c.l.b16 %v2147
        %v2436 = vunpack.c.l.b16 %v2148
        %v2437 = vunpack.c.l.b16 %v2149
        %v2438 = vunpack.c.l.b16 %v2150
        %v2439 = vunpack.c.l.b16 %v2151
        %v2440 = vunpack.c.l.b16 %v2152
        %v2441 = vunpack.c.l.b16 %v2153
        %v2442 = vunpack.c.l.b16 %v2154
        %v2443 = vunpack.c.l.b16 %v2155
        %v2444 = vunpack.c.l.b16 %v2156
        %v2445 = vunpack.c.l.b16 %v2157
        %v2446 = vunpack.c.l.b16 %v2158
        %v2447 = vunpack.c.l.b16 %v2159
        %v2448 = vunpack.c.l.b16 %v2160
        %v2449 = vunpack.c.l.b16 %v2161
        %v2450 = vunpack.c.l.b16 %v2162
        %v2451 = vunpack.c.l.b16 %v2163
        %v2452 = vunpack.c.l.b16 %v2164
        %v2453 = vunpack.c.l.b16 %v2165
        %v2454 = vunpack.c.l.b16 %v2166
        %v2455 = vunpack.c.l.b16 %v2167
        %v2456 = vunpack.c.l.b16 %v2168
        %v2457 = vunpack.c.l.b16 %v2169
        %v2458 = vunpack.c.l.b16 %v2170
        %v2459 = vunpack.c.l.b16 %v2171
        %v2460 = vunpack.c.l.b16 %v2172
        %v2461 = vunpack.c.l.b16 %v2173
        %v2462 = vunpack.c.l.b16 %v2174
        %v2463 = vunpack.c.l.b16 %v2175
        %v2464 = vunpack.c.l.b16 %v2176
        %v2465 = vunpack.c.l.b16 %v2177
        %v2466 = vunpack.c.l.b16 %v2178
        %v2467 = vunpack.c.l.b16 %v2179
        %v2468 = vunpack.c.l.b16 %v2180
        %v2469 = vunpack.c.l.b16 %v2181
        %v2470 = vunpack.c.l.b16 %v2182
        %v2471 = vunpack.c.l.b16 %v2183
        %v2472 = vunpack.c.l.b16 %v2184
        %v2473 = vunpack.c.l.b16 %v2185
        %v2474 = vpack.c.b16 %v2331, %v2330
        %v2475 = vpack.c.b16 %v2332, %v2332
        %v2476 = vpack.c.b16 %v2334, %v2333
        %v2477 = vpack.c.b16 %v2335, %v2335
        %v2478 = vpack.c.b16 %v2337, %v2336
        %v2479 = vpack.c.b16 %v2338, %v2338
        %v2480 = vpack.c.b16 %v2340, %v2339
        %v2481 = vpack.c.b16 %v2341, %v2341
        %v2482 = vpack.c.b16 %v2343, %v2342
        %v2483 = vpack.c.b16 %v2344, %v2344
        %v2484 = vpack.c.b16 %v2346, %v2345
        %v2485 = vpack.c.b16 %v2347, %v2347
        %v2486 = vpack.c.b16 %v2349, %v2348
        %v2487 = vpack.c.b16 %v2350, %v2350
        %v2488 = vpack.c.b16 %v2352, %v2351
        %v2489 = vpack.c.b16 %v2353, %v2353
        %v2490 = vpack.c.b16 %v2355, %v2354
        %v2491 = vpack.c.b16 %v2356, %v2356
        %v2492 = vpack.c.b16 %v2358, %v2357
        %v2493 = vpack.c.b16 %v2359, %v2359
        %v2494 = vpack.c.b16 %v2361, %v2360
        %v2495 = vpack.c.b16 %v2362, %v2362
        %v2496 = vpack.c.b16 %v2364, %v2363
        %v2497 = vpack.c.b16 %v2365, %v2365
        %v2498 = vpack.c.b16 %v2367, %v2366
        %v2499 = vpack.c.b16 %v2368, %v2368
        %v2500 = vpack.c.b16 %v2370, %v2369
        %v2501 = vpack.c.b16 %v2371, %v2371
        %v2502 = vpack.c.b16 %v2373, %v2372
        %v2503 = vpack.c.b16 %v2374, %v2374
        %v2504 = vpack.c.b16 %v2376, %v2375
        %v2505 = vpack.c.b16 %v2377, %v2377
        %v2506 = vpack.c.b16 %v2379, %v2378
        %v2507 = vpack.c.b16 %v2380, %v2380
        %v2508 = vpack.c.b16 %v2382, %v2381
        %v2509 = vpack.c.b16 %v2383, %v2383
        %v2510 = vpack.c.b16 %v2385, %v2384
        %v2511 = vpack.c.b16 %v2386, %v2386
        %v2512 = vpack.c.b16 %v2388, %v2387
        %v2513 = vpack.c.b16 %v2389, %v2389
        %v2514 = vpack.c.b16 %v2391, %v2390
        %v2515 = vpack.c.b16 %v2392, %v2392
        %v2516 = vpack.c.b16 %v2394, %v2393
        %v2517 = vpack.c.b16 %v2395, %v2395
        %v2518 = vpack.c.b16 %v2397, %v2396
        %v2519 = vpack.c.b16 %v2398, %v2398
        %v2520 = vpack.c.b16 %v2400, %v2399
        %v2521 = vpack.c.b16 %v2401, %v2401
        %v2522 = vpack.c.b16 %v2403, %v2402
        %v2523 = vpack.c.b16 %v2404, %v2404
        %v2524 = vpack.c.b16 %v2406, %v2405
        %v2525 = vpack.c.b16 %v2407, %v2407
        %v2526 = vpack.c.b16 %v2409, %v2408
        %v2527 = vpack.c.b16 %v2410, %v2410
        %v2528 = vpack.c.b16 %v2412, %v2411
        %v2529 = vpack.c.b16 %v2413, %v2413
        %v2530 = vpack.c.b16 %v2415, %v2414
        %v2531 = vpack.c.b16 %v2416, %v2416
        %v2532 = vpack.c.b16 %v2418, %v2417
        %v2533 = vpack.c.b16 %v2419, %v2419
        %v2534 = vpack.c.b16 %v2421, %v2420
        %v2535 = vpack.c.b16 %v2422, %v2422
        %v2536 = vpack.c.b16 %v2424, %v2423
        %v2537 = vpack.c.b16 %v2425, %v2425
        %v2538 = vpack.c.b16 %v2427, %v2426
        %v2539 = vpack.c.b16 %v2428, %v2428
        %v2540 = vpack.c.b16 %v2430, %v2429
        %v2541 = vpack.c.b16 %v2431, %v2431
        %v2542 = vpack.c.b16 %v2433, %v2432
        %v2543 = vpack.c.b16 %v2434, %v2434
        %v2544 = vpack.c.b16 %v2436, %v2435
        %v2545 = vpack.c.b16 %v2437, %v2437
        %v2546 = vpack.c.b16 %v2439, %v2438
        %v2547 = vpack.c.b16 %v2440, %v2440
        %v2548 = vpack.c.b16 %v2442, %v2441
        %v2549 = vpack.c.b16 %v2443, %v2443
        %v2550 = vpack.c.b16 %v2445, %v2444
        %v2551 = vpack.c.b16 %v2446, %v2446
        %v2552 = vpack.c.b16 %v2448, %v2447
        %v2553 = vpack.c.b16 %v2449, %v2449
        %v2554 = vpack.c.b16 %v2451, %v2450
        %v2555 = vpack.c.b16 %v2452, %v2452
        %v2556 = vpack.c.b16 %v2454, %v2453
        %v2557 = vpack.c.b16 %v2455, %v2455
        %v2558 = vpack.c.b16 %v2457, %v2456
        %v2559 = vpack.c.b16 %v2458, %v2458
        %v2560 = vpack.c.b16 %v2460, %v2459
        %v2561 = vpack.c.b16 %v2461, %v2461
        %v2562 = vpack.c.b16 %v2463, %v2462
        %v2563 = vpack.c.b16 %v2464, %v2464
        %v2564 = vpack.c.b16 %v2466, %v2465
        %v2565 = vpack.c.b16 %v2467, %v2467
        %v2566 = vpack.c.b16 %v2469, %v2468
        %v2567 = vpack.c.b16 %v2470, %v2470
        %v2568 = vpack.c.b16 %v2472, %v2471
        %v2569 = vpack.c.b16 %v2473, %v2473
        %v2570 = vunpack.c.l.b16 %v2474
        %v2571 = vunpack.c.h.b16 %v2474
        %v2572 = vunpack.c.l.b16 %v2475
        %v2573 = vunpack.c.l.b16 %v2476
        %v2574 = vunpack.c.h.b16 %v2476
        %v2575 = vunpack.c.l.b16 %v2477
        %v2576 = vunpack.c.l.b16 %v2478
        %v2577 = vunpack.c.h.b16 %v2478
        %v2578 = vunpack.c.l.b16 %v2479
        %v2579 = vunpack.c.l.b16 %v2480
        %v2580 = vunpack.c.h.b16 %v2480
        %v2581 = vunpack.c.l.b16 %v2481
        %v2582 = vunpack.c.l.b16 %v2482
        %v2583 = vunpack.c.h.b16 %v2482
        %v2584 = vunpack.c.l.b16 %v2483
        %v2585 = vunpack.c.l.b16 %v2484
        %v2586 = vunpack.c.h.b16 %v2484
        %v2587 = vunpack.c.l.b16 %v2485
        %v2588 = vunpack.c.l.b16 %v2486
        %v2589 = vunpack.c.h.b16 %v2486
        %v2590 = vunpack.c.l.b16 %v2487
        %v2591 = vunpack.c.l.b16 %v2488
        %v2592 = vunpack.c.h.b16 %v2488
        %v2593 = vunpack.c.l.b16 %v2489
        %v2594 = vunpack.c.l.b16 %v2490
        %v2595 = vunpack.c.h.b16 %v2490
        %v2596 = vunpack.c.l.b16 %v2491
        %v2597 = vunpack.c.l.b16 %v2492
        %v2598 = vunpack.c.h.b16 %v2492
        %v2599 = vunpack.c.l.b16 %v2493
        %v2600 = vunpack.c.l.b16 %v2494
        %v2601 = vunpack.c.h.b16 %v2494
        %v2602 = vunpack.c.l.b16 %v2495
        %v2603 = vunpack.c.l.b16 %v2496
        %v2604 = vunpack.c.h.b16 %v2496
        %v2605 = vunpack.c.l.b16 %v2497
        %v2606 = vunpack.c.l.b16 %v2498
        %v2607 = vunpack.c.h.b16 %v2498
        %v2608 = vunpack.c.l.b16 %v2499
        %v2609 = vunpack.c.l.b16 %v2500
        %v2610 = vunpack.c.h.b16 %v2500
        %v2611 = vunpack.c.l.b16 %v2501
        %v2612 = vunpack.c.l.b16 %v2502
        %v2613 = vunpack.c.h.b16 %v2502
        %v2614 = vunpack.c.l.b16 %v2503
        %v2615 = vunpack.c.l.b16 %v2504
        %v2616 = vunpack.c.h.b16 %v2504
        %v2617 = vunpack.c.l.b16 %v2505
        %v2618 = vunpack.c.l.b16 %v2506
        %v2619 = vunpack.c.h.b16 %v2506
        %v2620 = vunpack.c.l.b16 %v2507
        %v2621 = vunpack.c.l.b16 %v2508
        %v2622 = vunpack.c.h.b16 %v2508
        %v2623 = vunpack.c.l.b16 %v2509
        %v2624 = vunpack.c.l.b16 %v2510
        %v2625 = vunpack.c.h.b16 %v2510
        %v2626 = vunpack.c.l.b16 %v2511
        %v2627 = vunpack.c.l.b16 %v2512
        %v2628 = vunpack.c.h.b16 %v2512
        %v2629 = vunpack.c.l.b16 %v2513
        %v2630 = vunpack.c.l.b16 %v2514
        %v2631 = vunpack.c.h.b16 %v2514
        %v2632 = vunpack.c.l.b16 %v2515
        %v2633 = vunpack.c.l.b16 %v2516
        %v2634 = vunpack.c.h.b16 %v2516
        %v2635 = vunpack.c.l.b16 %v2517
        %v2636 = vunpack.c.l.b16 %v2518
        %v2637 = vunpack.c.h.b16 %v2518
        %v2638 = vunpack.c.l.b16 %v2519
        %v2639 = vunpack.c.l.b16 %v2520
        %v2640 = vunpack.c.h.b16 %v2520
        %v2641 = vunpack.c.l.b16 %v2521
        %v2642 = vunpack.c.l.b16 %v2522
        %v2643 = vunpack.c.h.b16 %v2522
        %v2644 = vunpack.c.l.b16 %v2523
        %v2645 = vunpack.c.l.b16 %v2524
        %v2646 = vunpack.c.h.b16 %v2524
        %v2647 = vunpack.c.l.b16 %v2525
        %v2648 = vunpack.c.l.b16 %v2526
        %v2649 = vunpack.c.h.b16 %v2526
        %v2650 = vunpack.c.l.b16 %v2527
        %v2651 = vunpack.c.l.b16 %v2528
        %v2652 = vunpack.c.h.b16 %v2528
        %v2653 = vunpack.c.l.b16 %v2529
        %v2654 = vunpack.c.l.b16 %v2530
        %v2655 = vunpack.c.h.b16 %v2530
        %v2656 = vunpack.c.l.b16 %v2531
        %v2657 = vunpack.c.l.b16 %v2532
        %v2658 = vunpack.c.h.b16 %v2532
        %v2659 = vunpack.c.l.b16 %v2533
        %v2660 = vunpack.c.l.b16 %v2534
        %v2661 = vunpack.c.h.b16 %v2534
        %v2662 = vunpack.c.l.b16 %v2535
        %v2663 = vunpack.c.l.b16 %v2536
        %v2664 = vunpack.c.h.b16 %v2536
        %v2665 = vunpack.c.l.b16 %v2537
        %v2666 = vunpack.c.l.b16 %v2538
        %v2667 = vunpack.c.h.b16 %v2538
        %v2668 = vunpack.c.l.b16 %v2539
        %v2669 = vunpack.c.l.b16 %v2540
        %v2670 = vunpack.c.h.b16 %v2540
        %v2671 = vunpack.c.l.b16 %v2541
        %v2672 = vunpack.c.l.b16 %v2542
        %v2673 = vunpack.c.h.b16 %v2542
        %v2674 = vunpack.c.l.b16 %v2543
        %v2675 = vunpack.c.l.b16 %v2544
        %v2676 = vunpack.c.h.b16 %v2544
        %v2677 = vunpack.c.l.b16 %v2545
        %v2678 = vunpack.c.l.b16 %v2546
        %v2679 = vunpack.c.h.b16 %v2546
        %v2680 = vunpack.c.l.b16 %v2547
        %v2681 = vunpack.c.l.b16 %v2548
        %v2682 = vunpack.c.h.b16 %v2548
        %v2683 = vunpack.c.l.b16 %v2549
        %v2684 = vunpack.c.l.b16 %v2550
        %v2685 = vunpack.c.h.b16 %v2550
        %v2686 = vunpack.c.l.b16 %v2551
        %v2687 = vunpack.c.l.b16 %v2552
        %v2688 = vunpack.c.h.b16 %v2552
        %v2689 = vunpack.c.l.b16 %v2553
        %v2690 = vunpack.c.l.b16 %v2554
        %v2691 = vunpack.c.h.b16 %v2554
        %v2692 = vunpack.c.l.b16 %v2555
        %v2693 = vunpack.c.l.b16 %v2556
        %v2694 = vunpack.c.h.b16 %v2556
        %v2695 = vunpack.c.l.b16 %v2557
        %v2696 = vunpack.c.l.b16 %v2558
        %v2697 = vunpack.c.h.b16 %v2558
        %v2698 = vunpack.c.l.b16 %v2559
        %v2699 = vunpack.c.l.b16 %v2560
        %v2700 = vunpack.c.h.b16 %v2560
        %v2701 = vunpack.c.l.b16 %v2561
        %v2702 = vunpack.c.l.b16 %v2562
        %v2703 = vunpack.c.h.b16 %v2562
        %v2704 = vunpack.c.l.b16 %v2563
        %v2705 = vunpack.c.l.b16 %v2564
        %v2706 = vunpack.c.h.b16 %v2564
        %v2707 = vunpack.c.l.b16 %v2565
        %v2708 = vunpack.c.l.b16 %v2566
        %v2709 = vunpack.c.h.b16 %v2566
        %v2710 = vunpack.c.l.b16 %v2567
        %v2711 = vunpack.c.l.b16 %v2568
        %v2712 = vunpack.c.h.b16 %v2568
        %v2713 = vunpack.c.l.b16 %v2569
        %vm2714 = vcmask 1041409
        %v2715 = vsel %vm2714, %v2573, %v2570
        %vm2716 = vcmask 1042434
        %v2717 = vsel %vm2716, %v2576, %v2715
        %vm2718 = vcmask 1043459
        %v2719 = vsel %vm2718, %v2579, %v2717
        %vm2720 = vcmask 1044484
        %v2721 = vsel %vm2720, %v2582, %v2719
        %vm2722 = vcmask 1045509
        %v2723 = vsel %vm2722, %v2585, %v2721
        %vm2724 = vcmask 1046534
        %v2725 = vsel %vm2724, %v2588, %v2723
        %vm2726 = vcmask 1047559
        %v2727 = vsel %vm2726, %v2591, %v2725
        %v2728 = vsel %vm2714, %v2574, %v2571
        %v2729 = vsel %vm2716, %v2577, %v2728
        %v2730 = vsel %vm2718, %v2580, %v2729
        %v2731 = vsel %vm2720, %v2583, %v2730
        %v2732 = vsel %vm2722, %v2586, %v2731
        %v2733 = vsel %vm2724, %v2589, %v2732
        %v2734 = vsel %vm2726, %v2592, %v2733
        %v2735 = vsel %vm2714, %v2575, %v2572
        %v2736 = vsel %vm2716, %v2578, %v2735
        %v2737 = vsel %vm2718, %v2581, %v2736
        %v2738 = vsel %vm2720, %v2584, %v2737
        %v2739 = vsel %vm2722, %v2587, %v2738
        %v2740 = vsel %vm2724, %v2590, %v2739
        %v2741 = vsel %vm2726, %v2593, %v2740
        %v2742 = vsel %vm2714, %v2597, %v2594
        %v2743 = vsel %vm2716, %v2600, %v2742
        %v2744 = vsel %vm2718, %v2603, %v2743
        %v2745 = vsel %vm2720, %v2606, %v2744
        %v2746 = vsel %vm2722, %v2609, %v2745
        %v2747 = vsel %vm2724, %v2612, %v2746
        %v2748 = vsel %vm2726, %v2615, %v2747
        %v2749 = vsel %vm2714, %v2598, %v2595
        %v2750 = vsel %vm2716, %v2601, %v2749
        %v2751 = vsel %vm2718, %v2604, %v2750
        %v2752 = vsel %vm2720, %v2607, %v2751
        %v2753 = vsel %vm2722, %v2610, %v2752
        %v2754 = vsel %vm2724, %v2613, %v2753
        %v2755 = vsel %vm2726, %v2616, %v2754
        %v2756 = vsel %vm2714, %v2599, %v2596
        %v2757 = vsel %vm2716, %v2602, %v2756
        %v2758 = vsel %vm2718, %v2605, %v2757
        %v2759 = vsel %vm2720, %v2608, %v2758
        %v2760 = vsel %vm2722, %v2611, %v2759
        %v2761 = vsel %vm2724, %v2614, %v2760
        %v2762 = vsel %vm2726, %v2617, %v2761
        %v2763 = vsel %vm2714, %v2621, %v2618
        %v2764 = vsel %vm2716, %v2624, %v2763
        %v2765 = vsel %vm2718, %v2627, %v2764
        %v2766 = vsel %vm2720, %v2630, %v2765
        %v2767 = vsel %vm2722, %v2633, %v2766
        %v2768 = vsel %vm2724, %v2636, %v2767
        %v2769 = vsel %vm2726, %v2639, %v2768
        %v2770 = vsel %vm2714, %v2622, %v2619
        %v2771 = vsel %vm2716, %v2625, %v2770
        %v2772 = vsel %vm2718, %v2628, %v2771
        %v2773 = vsel %vm2720, %v2631, %v2772
        %v2774 = vsel %vm2722, %v2634, %v2773
        %v2775 = vsel %vm2724, %v2637, %v2774
        %v2776 = vsel %vm2726, %v2640, %v2775
        %v2777 = vsel %vm2714, %v2623, %v2620
        %v2778 = vsel %vm2716, %v2626, %v2777
        %v2779 = vsel %vm2718, %v2629, %v2778
        %v2780 = vsel %vm2720, %v2632, %v2779
        %v2781 = vsel %vm2722, %v2635, %v2780
        %v2782 = vsel %vm2724, %v2638, %v2781
        %v2783 = vsel %vm2726, %v2641, %v2782
        %v2784 = vsel %vm2714, %v2645, %v2642
        %v2785 = vsel %vm2716, %v2648, %v2784
        %v2786 = vsel %vm2718, %v2651, %v2785
        %v2787 = vsel %vm2720, %v2654, %v2786
        %v2788 = vsel %vm2722, %v2657, %v2787
        %v2789 = vsel %vm2724, %v2660, %v2788
        %v2790 = vsel %vm2726, %v2663, %v2789
        %v2791 = vsel %vm2714, %v2646, %v2643
        %v2792 = vsel %vm2716, %v2649, %v2791
        %v2793 = vsel %vm2718, %v2652, %v2792
        %v2794 = vsel %vm2720, %v2655, %v2793
        %v2795 = vsel %vm2722, %v2658, %v2794
        %v2796 = vsel %vm2724, %v2661, %v2795
        %v2797 = vsel %vm2726, %v2664, %v2796
        %v2798 = vsel %vm2714, %v2647, %v2644
        %v2799 = vsel %vm2716, %v2650, %v2798
        %v2800 = vsel %vm2718, %v2653, %v2799
        %v2801 = vsel %vm2720, %v2656, %v2800
        %v2802 = vsel %vm2722, %v2659, %v2801
        %v2803 = vsel %vm2724, %v2662, %v2802
        %v2804 = vsel %vm2726, %v2665, %v2803
        %v2805 = vsel %vm2714, %v2669, %v2666
        %v2806 = vsel %vm2716, %v2672, %v2805
        %v2807 = vsel %vm2718, %v2675, %v2806
        %v2808 = vsel %vm2720, %v2678, %v2807
        %v2809 = vsel %vm2722, %v2681, %v2808
        %v2810 = vsel %vm2724, %v2684, %v2809
        %v2811 = vsel %vm2726, %v2687, %v2810
        %v2812 = vsel %vm2714, %v2670, %v2667
        %v2813 = vsel %vm2716, %v2673, %v2812
        %v2814 = vsel %vm2718, %v2676, %v2813
        %v2815 = vsel %vm2720, %v2679, %v2814
        %v2816 = vsel %vm2722, %v2682, %v2815
        %v2817 = vsel %vm2724, %v2685, %v2816
        %v2818 = vsel %vm2726, %v2688, %v2817
        %v2819 = vsel %vm2714, %v2671, %v2668
        %v2820 = vsel %vm2716, %v2674, %v2819
        %v2821 = vsel %vm2718, %v2677, %v2820
        %v2822 = vsel %vm2720, %v2680, %v2821
        %v2823 = vsel %vm2722, %v2683, %v2822
        %v2824 = vsel %vm2724, %v2686, %v2823
        %v2825 = vsel %vm2726, %v2689, %v2824
        %v2826 = vsel %vm2714, %v2693, %v2690
        %v2827 = vsel %vm2716, %v2696, %v2826
        %v2828 = vsel %vm2718, %v2699, %v2827
        %v2829 = vsel %vm2720, %v2702, %v2828
        %v2830 = vsel %vm2722, %v2705, %v2829
        %v2831 = vsel %vm2724, %v2708, %v2830
        %v2832 = vsel %vm2726, %v2711, %v2831
        %v2833 = vsel %vm2714, %v2694, %v2691
        %v2834 = vsel %vm2716, %v2697, %v2833
        %v2835 = vsel %vm2718, %v2700, %v2834
        %v2836 = vsel %vm2720, %v2703, %v2835
        %v2837 = vsel %vm2722, %v2706, %v2836
        %v2838 = vsel %vm2724, %v2709, %v2837
        %v2839 = vsel %vm2726, %v2712, %v2838
        %v2840 = vsel %vm2714, %v2695, %v2692
        %v2841 = vsel %vm2716, %v2698, %v2840
        %v2842 = vsel %vm2718, %v2701, %v2841
        %v2843 = vsel %vm2720, %v2704, %v2842
        %v2844 = vsel %vm2722, %v2707, %v2843
        %v2845 = vsel %vm2724, %v2710, %v2844
        %v2846 = vsel %vm2726, %v2713, %v2845
        %v2847 = vpack.c.b16 %v2734, %v2727
        %v2848 = vpack.c.b16 %v2741, %v2741
        %v2849 = vpack.c.b16 %v2755, %v2748
        %v2850 = vpack.c.b16 %v2762, %v2762
        %v2851 = vpack.c.b16 %v2776, %v2769
        %v2852 = vpack.c.b16 %v2783, %v2783
        %v2853 = vpack.c.b16 %v2797, %v2790
        %v2854 = vpack.c.b16 %v2804, %v2804
        %v2855 = vpack.c.b16 %v2818, %v2811
        %v2856 = vpack.c.b16 %v2825, %v2825
        %v2857 = vpack.c.b16 %v2839, %v2832
        %v2858 = vpack.c.b16 %v2846, %v2846
        %2871 = vst [vmem:[%s163] sm:$0xff] %v2847
        %2872 = vst [vmem:[%s163 + $0x8] sm:$0xf] %v2848
        %2873 = vst [vmem:[%s163 + $0xc] sm:$0xff] %v2849
        %2874 = vst [vmem:[%s163 + $0x14] sm:$0xf] %v2850
        %2875 = vst [vmem:[%s163 + $0x18] sm:$0xff] %v2851
        %2876 = vst [vmem:[%s163 + $0x20] sm:$0xf] %v2852
        %2877 = vst [vmem:[%s163 + $0x24] sm:$0xff] %v2853
        %2878 = vst [vmem:[%s163 + $0x2c] sm:$0xf] %v2854
        %2879 = vst [vmem:[%s163 + $0x30] sm:$0xff] %v2855
        %2880 = vst [vmem:[%s163 + $0x38] sm:$0xf] %v2856
        %2881 = vst [vmem:[%s163 + $0x3c] sm:$0xff] %v2857
        %2882 = vst [vmem:[%s163 + $0x44] sm:$0xf] %v2858
        %s2883 = sand.u32 %s93, 1
        %s2884 = scalar_lea.sflag [#allocation3], %s2883
        %s2885 = sand.u32 %s93, 1
        %s2886 = smul.addr %s2885, 72
        %s2887 = scalar_lea.vmem [#allocation2], %s2886
        // Predicated region
        $region33: #{tpu_custom_call.1} parent=31 // pred_check
          %p2888 = pneg %p103
        $region34: #{tpu_custom_call.1} parent=31 // pred_check_branch
          %2890 = sbr.rel (%p2888) target = $region36
        $region35: #{tpu_custom_call.1} parent=31 // pred_region
          %s2892 = ssub.s32 1152, 1152
          %2893 = vsyncadd %s2884, %s2892
          %s2894 = smul.addr %s17, 18
          %s2895 = smul.addr %s2894, 64
          %s2896 = scalar_lea.hbm %s3, %s2895
          %s2897 = sshll.u32 %s2887, 4
          %s2898 = int_to_ptr.vmem [resolvable:$true] %s2897
          %2903 = dma.vmem_to_hbm [thread:$0]  %s2898, 1152, %s2896, %s2884, 192, 192, 12
        $region36: #{tpu_custom_call.1} parent=31 // pred_fallthru
          _
      $region32: #{tpu_custom_call.1} parent=5 // pred_fallthru
        _
      %p2904 = scmp.le.s32.totalorder 2, %s12
      // Predicated region
      $region37: #{tpu_custom_call.1} parent=5 // pred_check
        %p2905 = pneg %p2904
      $region38: #{tpu_custom_call.1} parent=5 // pred_check_branch
        %2907 = sbr.rel (%p2905) target = $region40
      $region39: #{tpu_custom_call.1} parent=5 // pred_region
        %s2908 = ssub.s32 %s12, 2
        // Predicated region
        $region41: #{tpu_custom_call.1} parent=39 // pred_check
          %p2909 = pneg %p109
        $region42: #{tpu_custom_call.1} parent=39 // pred_check_branch
          %2911 = sbr.rel (%p2909) target = $region44
        $region43: #{tpu_custom_call.1} parent=39 // pred_region
          %s2912 = sand.u32 %s94, 1
          %s2913 = scalar_lea.sflag [#allocation3], %s2912
          %s2914 = sand.u32 %s94, 1
          %s2915 = smul.addr %s2914, 72
          %s2916 = scalar_lea.vmem [#allocation2], %s2915
          %2917 = dma.done %s2913, 1152
        $region44: #{tpu_custom_call.1} parent=39 // pred_fallthru
          _
      $region40: #{tpu_custom_call.1} parent=5 // pred_fallthru
        _
    $region6: #{tpu_custom_call.1} parent=1 // loop_footer
      %s16 = sadd.s32 1, %s12
    $region7: #{tpu_custom_call.1} parent=1 // loop_footer_branch
      %11 = sbr.rel target = $region3
    $region8: #{tpu_custom_call.1} parent=1 // loop_exit
      _
    %2918 = vsyncpa [#allocation3], 1
    %s2919 = scalar_lea.sflag [#allocation3], 1
    %2920 = vsyncpa %s2919, 1

</llo_original>
